<compile_context>
chip_gen: v6e
topology: v6e:2x2x1
jax: 0.10.0
libtpu: 0.0.40
codegen_flags: <defaults>
</compile_context>

<pallas_src>
import functools

import jax
import jax.numpy as jnp
from jax.experimental import pallas as pl
from jax.experimental.pallas import tpu as pltpu

LANE = 128  # lane width: channel dims padded to multiples of this


def _round_up(x, m):
    return (x + m - 1) // m * m


def _vmem_limit_bytes():
    # Per-generation VMEM budget (review items 3/5).
    try:
        cap = int(pltpu.get_tpu_info().vmem_capacity_bytes)
        return max(32 << 20, min(int(cap * 0.82), 110 << 20))
    except Exception:
        return 64 << 20  # safe everywhere


def _pick_tm(m):
    # Review items 4/9: tile up to 512 rows, but keep >= 4 grid steps so both
    # v7x TensorCores stay busy on small shapes.
    tm = 512
    while tm > 8 and m < 4 * tm:
        tm //= 2
    return max(tm, 8)


# ---------------------------------------------------------------------------
# Kernel A: in-kernel halo im2col, 3x3 / stride 1 / pad 1, fused BN + ReLU
# (+ optional identity residual or 1x1 projection shortcut).
# ---------------------------------------------------------------------------
def _make_conv3x3_kernel(wp, mode):
    """Conv over a flat padded-image layout.

    Input ref: (1, Hp*Wp + 2, Cin) = padded image flattened row-major (+2 rows
    of overrun slack).  Output row j = h*wp + w holds out[h, w]; columns
    w >= Wo are don't-care, except in 'mask' mode where they are zeroed so the
    result can be chained into the next conv with a single jnp.pad."""

    def kernel(*refs):
        if mode == "project":
            x_ref, w_ref, b_ref, xs_ref, ws_ref, bs_ref, o_ref = refs
        elif mode == "residual":
            x_ref, w_ref, b_ref, r_ref, o_ref = refs
        elif mode == "mask":
            x_ref, w_ref, b_ref, m_ref, o_ref = refs
        else:
            x_ref, w_ref, b_ref, o_ref = refs

        nrows, cout = o_ref.shape[1], o_ref.shape[2]
        acc = jnp.zeros((nrows, cout), jnp.float32)
        # 9 shifted matmuls; static unaligned sublane slices of the VMEM block.
        for dy in range(3):
            for dx in range(3):
                off = dy * wp + dx
                patch = x_ref[0, off:off + nrows, :]
                acc = acc + jnp.dot(patch, w_ref[dy * 3 + dx],
                                    preferred_element_type=jnp.float32)
        acc = acc + b_ref[...]
        if mode == "project":          # fused 1x1 projection shortcut + its BN
            acc = acc + jnp.dot(xs_ref[0], ws_ref[...],
                                preferred_element_type=jnp.float32) + bs_ref[...]
        elif mode == "residual":       # fused identity shortcut (bf16 stream)
            acc = acc + r_ref[0].astype(jnp.float32)
        out = jnp.maximum(acc, 0.0)
        if mode == "mask":             # zero garbage columns for chaining
            out = out * m_ref[...]
        o_ref[0] = out.astype(o_ref.dtype)

    return kernel


def _conv3x3_s1(x_flat, wp, w9, bias, *, mode="plain", mask=None,
                residual=None, xs=None, ws=None, bs=None,
                out_rows, out_dtype=jnp.bfloat16):
    """x_flat: (N, Lin, Cin_p) bf16; w9: (9, Cin_p, Cp) bf16; bias: (1, Cp) f32."""
    N, Lin, Cin_p = x_flat.shape
    Cp = w9.shape[2]

    def img_spec(cols):
        return pl.BlockSpec((1, out_rows, cols), lambda n: (n, 0, 0))

    def fixed_spec(shape):
        return pl.BlockSpec(shape, lambda n, _s=shape: tuple(0 for _ in _s))

    inputs = [x_flat, w9, bias]
    in_specs = [pl.BlockSpec((1, Lin, Cin_p), lambda n: (n, 0, 0)),
                fixed_spec(w9.shape), fixed_spec(bias.shape)]
    if mode == "project":
        inputs += [xs, ws, bs]
        in_specs += [img_spec(xs.shape[2]), fixed_spec(ws.shape),
                     fixed_spec(bs.shape)]
    elif mode == "residual":
        inputs += [residual]
        in_specs += [img_spec(residual.shape[2])]
    elif mode == "mask":
        inputs += [mask]
        in_specs += [fixed_spec(mask.shape)]

    flops = 2 * N * out_rows * Cin_p * Cp * 9
    if mode == "project":
        flops += 2 * N * out_rows * xs.shape[2] * Cp
    bytes_accessed = sum(int(a.size) * a.dtype.itemsize for a in inputs)
    bytes_accessed += N * out_rows * Cp * jnp.dtype(out_dtype).itemsize

    return pl.pallas_call(
        _make_conv3x3_kernel(wp, mode),
        out_shape=jax.ShapeDtypeStruct((N, out_rows, Cp), out_dtype),
        grid=(N,),
        in_specs=in_specs,
        out_specs=pl.BlockSpec((1, out_rows, Cp), lambda n: (n, 0, 0)),
        compiler_params=pltpu.CompilerParams(
            dimension_semantics=("parallel",),
            vmem_limit_bytes=_vmem_limit_bytes()),
        cost_estimate=pl.CostEstimate(flops=int(flops), transcendentals=0,
                                      bytes_accessed=int(bytes_accessed)),
    )(*inputs)


# ---------------------------------------------------------------------------
# Kernel B: gridded im2col matmul (kept only for the strided conv1).
# ---------------------------------------------------------------------------
def _conv_bn_relu_matmul_kernel(p_ref, w_ref, b_ref, o_ref):
    acc = jnp.dot(p_ref[...], w_ref[...], preferred_element_type=jnp.float32)
    o_ref[...] = jnp.maximum(acc + b_ref[...], 0.0).astype(o_ref.dtype)


def _im2col_conv(patches, w_mat, bias, out_dtype=jnp.bfloat16):
    """patches: (M, Kp) bf16; w_mat: (Kp, Cp) bf16; bias: (1, Cp) f32 -> (M, Cp)."""
    M, Kp = patches.shape
    Cp = w_mat.shape[1]
    tm = _pick_tm(M)
    Mp = _round_up(M, tm)
    patches = jnp.pad(patches, ((0, Mp - M), (0, 0)))

    out = pl.pallas_call(
        _conv_bn_relu_matmul_kernel,
        out_shape=jax.ShapeDtypeStruct((Mp, Cp), out_dtype),
        grid=(Mp // tm,),
        in_specs=[pl.BlockSpec((tm, Kp), lambda i: (i, 0)),
                  pl.BlockSpec((Kp, Cp), lambda i: (0, 0)),
                  pl.BlockSpec((1, Cp), lambda i: (0, 0))],
        out_specs=pl.BlockSpec((tm, Cp), lambda i: (i, 0)),
        compiler_params=pltpu.CompilerParams(
            dimension_semantics=("parallel",),
            vmem_limit_bytes=_vmem_limit_bytes()),
        cost_estimate=pl.CostEstimate(
            flops=2 * Mp * Kp * Cp, transcendentals=0,
            bytes_accessed=int(patches.size * 2 + w_mat.size * 2
                               + Mp * Cp * jnp.dtype(out_dtype).itemsize)),
    )(patches, w_mat, bias)
    return out[:M]


# ---------------------------------------------------------------------------
# Glue: layout helpers, BN folding, forward pass
# ---------------------------------------------------------------------------
def _im2col3x3(x_nhwc, stride):
    """3x3 conv, padding=1 -> (N*Ho*Wo, 9*C), column order (dy, dx, c)."""
    N, H, W, C = x_nhwc.shape
    xp = jnp.pad(x_nhwc, ((0, 0), (1, 1), (1, 1), (0, 0)))
    Ho = (H + 2 - 3) // stride + 1
    Wo = (W + 2 - 3) // stride + 1
    cols = []
    for dy in range(3):
        for dx in range(3):
            cols.append(xp[:, dy:dy + stride * Ho:stride,
                            dx:dx + stride * Wo:stride, :])
    p = jnp.stack(cols, axis=3)                      # (N, Ho, Wo, 9, C)
    return p.reshape(N * Ho * Wo, 9 * C), (N, Ho, Wo)


def _flatten_padded_nhwc(x_nhwc):
    """(N,H,W,C) -> flat (N, (H+2)*(W+2)+2, C): 1-pixel zero border + 2 rows slack."""
    N, H, W, C = x_nhwc.shape
    wp = W + 2
    xp = jnp.pad(x_nhwc, ((0, 0), (1, 1), (1, 1), (0, 0)))
    flat = xp.reshape(N, (H + 2) * wp, C)
    flat = jnp.pad(flat, ((0, 0), (0, 2), (0, 0)))
    return flat, wp


def _fold_bn(gamma, beta, mean, var, eps=1e-5):
    scale = gamma / jnp.sqrt(var + eps)
    bias = beta - mean * scale
    return scale, bias


@functools.partial(jax.jit, static_argnames=("stride",))
def basic_block_forward(x_nchw, params, stride):
    """BasicBlock forward.  x: (N, Cin, H, W) f32 -> (N, planes, Ho, Wo) f32."""
    N, Cin, H, W = x_nchw.shape
    planes = params["conv1_w"].shape[0]
    has_proj = (stride != 1) or (Cin != planes)

    Cp = _round_up(planes, LANE)
    Cin_p = _round_up(Cin, LANE)

    x_nhwc = jnp.transpose(x_nchw, (0, 2, 3, 1))
    x_bf16 = x_nhwc.astype(jnp.bfloat16)

    s1, b1 = _fold_bn(params["bn1_g"], params["bn1_b"],
                      params["bn1_m"], params["bn1_v"])
    s2, b2 = _fold_bn(params["bn2_g"], params["bn2_b"],
                      params["bn2_m"], params["bn2_v"])

    # OIHW -> (ky, kx, cin, cout), BN scale folded in.
    w1 = jnp.transpose(params["conv1_w"], (2, 3, 1, 0)) * s1[None, None, None, :]
    w2 = jnp.transpose(params["conv2_w"], (2, 3, 1, 0)) * s2[None, None, None, :]
    b1p = jnp.pad(b1, (0, Cp - planes)).reshape(1, Cp).astype(jnp.float32)
    b2p = jnp.pad(b2, (0, Cp - planes)).reshape(1, Cp).astype(jnp.float32)

    Ho = (H + 2 - 3) // stride + 1
    Wo = (W + 2 - 3) // stride + 1

    # ---- conv1 + bn1 + relu -------------------------------------------------
    if stride == 1:
        # In-kernel halo im2col (review item 1): activation streamed once.
        w1_9 = jnp.pad(w1, ((0, 0), (0, 0), (0, Cin_p - Cin), (0, Cp - planes)))
        w1_9 = w1_9.reshape(9, Cin_p, Cp).astype(jnp.bfloat16)
        x1 = jnp.pad(x_bf16, ((0, 0), (0, 0), (0, 0), (0, Cin_p - Cin)))
        x1_flat, wp = _flatten_padded_nhwc(x1)
        rows1 = Ho * wp
        mask = ((jnp.arange(rows1) % wp) < Wo).astype(jnp.float32).reshape(rows1, 1)
        out1_flat = _conv3x3_s1(x1_flat, wp, w1_9, b1p, mode="mask", mask=mask,
                                out_rows=rows1, out_dtype=jnp.bfloat16)
        # conv2's zero-padded flat input is just a shifted copy of out1_flat.
        x2_flat = jnp.pad(out1_flat, ((0, 0), (wp + 1, wp + 1), (0, 0)))
        wp2 = wp
    else:
        # TODO(synk): in-kernel strided halo im2col for the stride-2 conv1.
        p1, _ = _im2col3x3(x_bf16, stride)                       # (M, 9*Cin)
        Kp1 = _round_up(9 * Cin, LANE)
        p1 = jnp.pad(p1, ((0, 0), (0, Kp1 - 9 * Cin)))
        w1m = w1.reshape(9 * Cin, planes)
        w1m = jnp.pad(w1m, ((0, Kp1 - 9 * Cin), (0, Cp - planes))).astype(jnp.bfloat16)
        out1 = _im2col_conv(p1, w1m, b1p, out_dtype=jnp.bfloat16)  # (M, Cp)
        out1_nhwc = out1.reshape(N, Ho, Wo, Cp)
        x2_flat, wp2 = _flatten_padded_nhwc(out1_nhwc)

    # ---- conv2 + bn2 + shortcut + relu (in-kernel im2col, fused epilogue) ---
    w2_9 = jnp.pad(w2, ((0, 0), (0, 0), (0, Cp - planes), (0, Cp - planes)))
    w2_9 = w2_9.reshape(9, Cp, Cp).astype(jnp.bfloat16)
    rows2 = Ho * wp2

    if has_proj:
        ss, bsh = _fold_bn(params["scbn_g"], params["scbn_b"],
                           params["scbn_m"], params["scbn_v"])
        w_sc = jnp.transpose(params["sc_w"].reshape(planes, Cin)) * ss[None, :]
        w_sc = jnp.pad(w_sc, ((0, Cin_p - Cin), (0, Cp - planes))).astype(jnp.bfloat16)
        bsp = jnp.pad(bsh, (0, Cp - planes)).reshape(1, Cp).astype(jnp.float32)
        xs = x_bf16[:, ::stride, ::stride, :][:, :Ho, :Wo, :]
        xs = jnp.pad(xs, ((0, 0), (0, 0), (0, wp2 - Wo), (0, Cin_p - Cin)))
        xs = xs.reshape(N, rows2, Cin_p)
        out2_flat = _conv3x3_s1(x2_flat, wp2, w2_9, b2p, mode="project",
                                xs=xs, ws=w_sc, bs=bsp,
                                out_rows=rows2, out_dtype=jnp.bfloat16)
    else:
        # Identity shortcut streamed as bf16 (review item 7), no f32 staging copy.
        res = jnp.pad(x_bf16, ((0, 0), (0, 0), (0, wp2 - W), (0, Cp - Cin)))
        res = res.reshape(N, rows2, Cp)
        out2_flat = _conv3x3_s1(x2_flat, wp2, w2_9, b2p, mode="residual",
                                residual=res, out_rows=rows2,
                                out_dtype=jnp.bfloat16)

    out = out2_flat.reshape(N, Ho, wp2, Cp)[:, :, :Wo, :planes]
    return jnp.transpose(out, (0, 3, 1, 2)).astype(jnp.float32)


# ---------------------------------------------------------------------------
# Pure-JAX reference (correctness check)
# ---------------------------------------------------------------------------
def _conv_ref(x, w, stride, pad):
    return jax.lax.conv_general_dilated(
        x, w, window_strides=(stride, stride),
        padding=((pad, pad), (pad, pad)),
        dimension_numbers=("NCHW", "OIHW", "NCHW"))


def _bn_ref(x, g, b, m, v, eps=1e-5):
    g = g[None, :, None, None]
    b = b[None, :, None, None]
    m = m[None, :, None, None]
    v = v[None, :, None, None]
    return (x - m) / jnp.sqrt(v + eps) * g + b


def basic_block_ref(x, params, stride):
    planes = params["conv1_w"].shape[0]
    Cin = x.shape[1]
    out = jax.nn.relu(_bn_ref(_conv_ref(x, params["conv1_w"], stride, 1),
                              params["bn1_g"], params["bn1_b"],
                              params["bn1_m"], params["bn1_v"]))
    out = _bn_ref(_conv_ref(out, params["conv2_w"], 1, 1),
                  params["bn2_g"], params["bn2_b"],
                  params["bn2_m"], params["bn2_v"])
    if stride != 1 or Cin != planes:
        sc = _bn_ref(_conv_ref(x, params["sc_w"], stride, 0),
                     params["scbn_g"], params["scbn_b"],
                     params["scbn_m"], params["scbn_v"])
    else:
        sc = x
    return jax.nn.relu(out + sc)


def init_params(key, in_planes, planes, stride):
    ks = jax.random.split(key, 12)
    p = {
        "conv1_w": 0.1 * jax.random.normal(ks[0], (planes, in_planes, 3, 3), jnp.float32),
        "bn1_g": 0.5 + jax.random.uniform(ks[1], (planes,), jnp.float32),
        "bn1_b": 0.1 * jax.random.normal(ks[2], (planes,), jnp.float32),
        "bn1_m": 0.1 * jax.random.normal(ks[3], (planes,), jnp.float32),
        "bn1_v": 0.5 + jax.random.uniform(ks[4], (planes,), jnp.float32),
        "conv2_w": 0.1 * jax.random.normal(ks[5], (planes, planes, 3, 3), jnp.float32),
        "bn2_g": 0.5 + jax.random.uniform(ks[6], (planes,), jnp.float32),
        "bn2_b": 0.1 * jax.random.normal(ks[7], (planes,), jnp.float32),
        "bn2_m": 0.1 * jax.random.normal(ks[8], (planes,), jnp.float32),
        "bn2_v": 0.5 + jax.random.uniform(ks[9], (planes,), jnp.float32),
    }
    if stride != 1 or in_planes != planes:
        ksc = jax.random.split(ks[10], 5)
        p.update({
            "sc_w": 0.1 * jax.random.normal(ksc[0], (planes, in_planes, 1, 1), jnp.float32),
            "scbn_g": 0.5 + jax.random.uniform(ksc[1], (planes,), jnp.float32),
            "scbn_b": 0.1 * jax.random.normal(ksc[2], (planes,), jnp.float32),
            "scbn_m": 0.1 * jax.random.normal(ksc[3], (planes,), jnp.float32),
            "scbn_v": 0.5 + jax.random.uniform(ksc[4], (planes,), jnp.float32),
        })
    return p


if __name__ == "__main__":
    key = jax.random.PRNGKey(0)

    configs = [
        # (N, Cin, H, W, planes, stride)
        (2, 4, 16, 16, 8, 2),   # projection shortcut: im2col conv1 + fused 1x1 proj in conv2
        (2, 8, 16, 16, 8, 1),   # identity shortcut: both convs via in-kernel halo im2col
    ]
    for idx, (N, Cin, H, W, planes, stride) in enumerate(configs):
        k_x, k_p = jax.random.split(jax.random.fold_in(key, idx))
        x = jax.random.normal(k_x, (N, Cin, H, W), jnp.float32)
        params = init_params(k_p, Cin, planes, stride)

        out = jax.block_until_ready(basic_block_forward(x, params, stride=stride))
        ref = jax.block_until_ready(basic_block_ref(x, params, stride))

        assert out.shape == ref.shape, (out.shape, ref.shape)
        err = float(jnp.max(jnp.abs(out - ref)))
        # bf16 MXU operands + bf16 activation/output streams vs f32 reference.
        assert err < 7e-2, (idx, err)

    print("KERNEL_OK")
</pallas_src>

<mosaic_0001>
module attributes {stable_mosaic.version = 11 : i64} {
  func.func @_conv_bn_relu_matmul_kernel(%arg0: i32, %arg1: memref<32x128xbf16, #tpu.memory_space<vmem>>, %arg2: memref<128x128xbf16, #tpu.memory_space<vmem>>, %arg3: memref<1x128xf32, #tpu.memory_space<vmem>>, %arg4: memref<32x128xbf16, #tpu.memory_space<vmem>>) attributes {dimension_semantics = [#tpu.dimension_semantics<parallel>], iteration_bounds = array<i64: 4>, scalar_prefetch = 0 : i64, scratch_operands = 0 : i64, tpu.core_type = #tpu.core_type<tc>, window_params = [{transform_indices = @transform_0, window_bounds = array<i64: 32, 128>}, {pipeline_mode = #tpu.pipeline_mode<synchronous>, transform_indices = @transform_1, window_bounds = array<i64: 128, 128>}, {pipeline_mode = #tpu.pipeline_mode<synchronous>, transform_indices = @transform_2, window_bounds = array<i64: 1, 128>}, {transform_indices = @transform_3, window_bounds = array<i64: 32, 128>}]} {
    %c0 = arith.constant 0 : index
    %c0_0 = arith.constant 0 : index
    %0 = vector.load %arg1[%c0, %c0_0] : memref<32x128xbf16, #tpu.memory_space<vmem>>, vector<32x128xbf16>
    %c0_1 = arith.constant 0 : index
    %c0_2 = arith.constant 0 : index
    %1 = vector.load %arg2[%c0_1, %c0_2] : memref<128x128xbf16, #tpu.memory_space<vmem>>, vector<128x128xbf16>
    %cst = arith.constant dense<0.000000e+00> : vector<32x128xf32>
    %2 = tpu.matmul %0, %1, %cst {dimension_numbers = #tpu.dot_dimension_numbers<[1], [0], [0], [1], [0, 0, 1, 1], [], []>} : vector<32x128xbf16>, vector<128x128xbf16>, vector<32x128xf32> -> vector<32x128xf32>
    %c0_3 = arith.constant 0 : index
    %c0_4 = arith.constant 0 : index
    %3 = vector.load %arg3[%c0_3, %c0_4] : memref<1x128xf32, #tpu.memory_space<vmem>>, vector<1x128xf32>
    %4 = vector.broadcast %3 : vector<1x128xf32> to vector<32x128xf32>
    %5 = arith.addf %2, %4 : vector<32x128xf32>
    %cst_5 = arith.constant 0.000000e+00 : f32
    %6 = vector.broadcast %cst_5 : f32 to vector<32x128xf32>
    %7 = arith.maximumf %5, %6 : vector<32x128xf32>
    %8 = arith.truncf %7 : vector<32x128xf32> to vector<32x128xbf16>
    %c0_6 = arith.constant 0 : index
    %c0_7 = arith.constant 0 : index
    %9 = vector.load %arg4[%c0_6, %c0_7] : memref<32x128xbf16, #tpu.memory_space<vmem>>, vector<32x128xbf16>
    tpu.vector_store %arg4[%c0_6, %c0_7], %8 {strides = array<i32>} : memref<32x128xbf16, #tpu.memory_space<vmem>>, vector<32x128xbf16>,
    return
  }
  func.func @transform_0(%arg0: i32) -> (i32, i32) {
    %c0_i32 = arith.constant 0 : i32
    %c0_i32_0 = arith.constant 0 : i32
    return %arg0, %c0_i32 : i32, i32
  }
  func.func @transform_1(%arg0: i32) -> (i32, i32) {
    %c0_i32 = arith.constant 0 : i32
    %c0_i32_0 = arith.constant 0 : i32
    %c0_i32_1 = arith.constant 0 : i32
    return %c0_i32, %c0_i32_0 : i32, i32
  }
  func.func @transform_2(%arg0: i32) -> (i32, i32) {
    %c0_i32 = arith.constant 0 : i32
    %c0_i32_0 = arith.constant 0 : i32
    %c0_i32_1 = arith.constant 0 : i32
    return %c0_i32, %c0_i32_0 : i32, i32
  }
  func.func @transform_3(%arg0: i32) -> (i32, i32) {
    %c0_i32 = arith.constant 0 : i32
    %c0_i32_0 = arith.constant 0 : i32
    return %arg0, %c0_i32 : i32, i32
  }
}

module attributes {stable_mosaic.version = 11 : i64} {
  func.func @kernel(%arg0: i32, %arg1: memref<1x102x128xbf16, #tpu.memory_space<vmem>>, %arg2: memref<9x128x128xbf16, #tpu.memory_space<vmem>>, %arg3: memref<1x128xf32, #tpu.memory_space<vmem>>, %arg4: memref<1x80x128xbf16, #tpu.memory_space<vmem>>, %arg5: memref<128x128xbf16, #tpu.memory_space<vmem>>, %arg6: memref<1x128xf32, #tpu.memory_space<vmem>>, %arg7: memref<1x80x128xbf16, #tpu.memory_space<vmem>>) attributes {dimension_semantics = [#tpu.dimension_semantics<parallel>], iteration_bounds = array<i64: 2>, scalar_prefetch = 0 : i64, scratch_operands = 0 : i64, tpu.core_type = #tpu.core_type<tc>, window_params = [{transform_indices = @transform_0, window_bounds = array<i64: 1, 102, 128>}, {pipeline_mode = #tpu.pipeline_mode<synchronous>, transform_indices = @transform_1, window_bounds = array<i64: 9, 128, 128>}, {pipeline_mode = #tpu.pipeline_mode<synchronous>, transform_indices = @transform_2, window_bounds = array<i64: 1, 128>}, {transform_indices = @transform_3, window_bounds = array<i64: 1, 80, 128>}, {pipeline_mode = #tpu.pipeline_mode<synchronous>, transform_indices = @transform_4, window_bounds = array<i64: 128, 128>}, {pipeline_mode = #tpu.pipeline_mode<synchronous>, transform_indices = @transform_5, window_bounds = array<i64: 1, 128>}, {transform_indices = @transform_6, window_bounds = array<i64: 1, 80, 128>}]} {
    %cst = arith.constant 0.000000e+00 : f32
    %0 = vector.broadcast %cst : f32 to vector<80x128xf32>
    %c0 = arith.constant 0 : index
    %c0_0 = arith.constant 0 : index
    %c0_1 = arith.constant 0 : index
    %1 = vector.load %arg1[%c0, %c0_0, %c0_1] : memref<1x102x128xbf16, #tpu.memory_space<vmem>>, vector<1x80x128xbf16>
    %2 = vector.shape_cast %1 : vector<1x80x128xbf16> to vector<80x128xbf16>
    %c0_2 = arith.constant 0 : index
    %c0_3 = arith.constant 0 : index
    %c0_4 = arith.constant 0 : index
    %3 = vector.load %arg2[%c0_2, %c0_3, %c0_4] : memref<9x128x128xbf16, #tpu.memory_space<vmem>>, vector<1x128x128xbf16>
    %4 = vector.shape_cast %3 : vector<1x128x128xbf16> to vector<128x128xbf16>
    %cst_5 = arith.constant dense<0.000000e+00> : vector<80x128xf32>
    %5 = tpu.matmul %2, %4, %cst_5 {dimension_numbers = #tpu.dot_dimension_numbers<[1], [0], [0], [1], [0, 0, 1, 1], [], []>} : vector<80x128xbf16>, vector<128x128xbf16>, vector<80x128xf32> -> vector<80x128xf32>
    %6 = arith.addf %0, %5 : vector<80x128xf32>
    %c0_6 = arith.constant 0 : index
    %c1 = arith.constant 1 : index
    %c0_7 = arith.constant 0 : index
    %7 = vector.load %arg1[%c0_6, %c1, %c0_7] : memref<1x102x128xbf16, #tpu.memory_space<vmem>>, vector<1x80x128xbf16>
    %8 = vector.shape_cast %7 : vector<1x80x128xbf16> to vector<80x128xbf16>
    %c1_8 = arith.constant 1 : index
    %c0_9 = arith.constant 0 : index
    %c0_10 = arith.constant 0 : index
    %9 = vector.load %arg2[%c1_8, %c0_9, %c0_10] : memref<9x128x128xbf16, #tpu.memory_space<vmem>>, vector<1x128x128xbf16>
    %10 = vector.shape_cast %9 : vector<1x128x128xbf16> to vector<128x128xbf16>
    %cst_11 = arith.constant dense<0.000000e+00> : vector<80x128xf32>
    %11 = tpu.matmul %8, %10, %cst_11 {dimension_numbers = #tpu.dot_dimension_numbers<[1], [0], [0], [1], [0, 0, 1, 1], [], []>} : vector<80x128xbf16>, vector<128x128xbf16>, vector<80x128xf32> -> vector<80x128xf32>
    %12 = arith.addf %6, %11 : vector<80x128xf32>
    %c0_12 = arith.constant 0 : index
    %c2 = arith.constant 2 : index
    %c0_13 = arith.constant 0 : index
    %13 = vector.load %arg1[%c0_12, %c2, %c0_13] : memref<1x102x128xbf16, #tpu.memory_space<vmem>>, vector<1x80x128xbf16>
    %14 = vector.shape_cast %13 : vector<1x80x128xbf16> to vector<80x128xbf16>
    %c2_14 = arith.constant 2 : index
    %c0_15 = arith.constant 0 : index
    %c0_16 = arith.constant 0 : index
    %15 = vector.load %arg2[%c2_14, %c0_15, %c0_16] : memref<9x128x128xbf16, #tpu.memory_space<vmem>>, vector<1x128x128xbf16>
    %16 = vector.shape_cast %15 : vector<1x128x128xbf16> to vector<128x128xbf16>
    %cst_17 = arith.constant dense<0.000000e+00> : vector<80x128xf32>
    %17 = tpu.matmul %14, %16, %cst_17 {dimension_numbers = #tpu.dot_dimension_numbers<[1], [0], [0], [1], [0, 0, 1, 1], [], []>} : vector<80x128xbf16>, vector<128x128xbf16>, vector<80x128xf32> -> vector<80x128xf32>
    %18 = arith.addf %12, %17 : vector<80x128xf32>
    %c0_18 = arith.constant 0 : index
    %c10 = arith.constant 10 : index
    %c0_19 = arith.constant 0 : index
    %19 = vector.load %arg1[%c0_18, %c10, %c0_19] : memref<1x102x128xbf16, #tpu.memory_space<vmem>>, vector<1x80x128xbf16>
    %20 = vector.shape_cast %19 : vector<1x80x128xbf16> to vector<80x128xbf16>
    %c3 = arith.constant 3 : index
    %c0_20 = arith.constant 0 : index
    %c0_21 = arith.constant 0 : index
    %21 = vector.load %arg2[%c3, %c0_20, %c0_21] : memref<9x128x128xbf16, #tpu.memory_space<vmem>>, vector<1x128x128xbf16>
    %22 = vector.shape_cast %21 : vector<1x128x128xbf16> to vector<128x128xbf16>
    %cst_22 = arith.constant dense<0.000000e+00> : vector<80x128xf32>
    %23 = tpu.matmul %20, %22, %cst_22 {dimension_numbers = #tpu.dot_dimension_numbers<[1], [0], [0], [1], [0, 0, 1, 1], [], []>} : vector<80x128xbf16>, vector<128x128xbf16>, vector<80x128xf32> -> vector<80x128xf32>
    %24 = arith.addf %18, %23 : vector<80x128xf32>
    %c0_23 = arith.constant 0 : index
    %c11 = arith.constant 11 : index
    %c0_24 = arith.constant 0 : index
    %25 = vector.load %arg1[%c0_23, %c11, %c0_24] : memref<1x102x128xbf16, #tpu.memory_space<vmem>>, vector<1x80x128xbf16>
    %26 = vector.shape_cast %25 : vector<1x80x128xbf16> to vector<80x128xbf16>
    %c4 = arith.constant 4 : index
    %c0_25 = arith.constant 0 : index
    %c0_26 = arith.constant 0 : index
    %27 = vector.load %arg2[%c4, %c0_25, %c0_26] : memref<9x128x128xbf16, #tpu.memory_space<vmem>>, vector<1x128x128xbf16>
    %28 = vector.shape_cast %27 : vector<1x128x128xbf16> to vector<128x128xbf16>
    %cst_27 = arith.constant dense<0.000000e+00> : vector<80x128xf32>
    %29 = tpu.matmul %26, %28, %cst_27 {dimension_numbers = #tpu.dot_dimension_numbers<[1], [0], [0], [1], [0, 0, 1, 1], [], []>} : vector<80x128xbf16>, vector<128x128xbf16>, vector<80x128xf32> -> vector<80x128xf32>
    %30 = arith.addf %24, %29 : vector<80x128xf32>
    %c0_28 = arith.constant 0 : index
    %c12 = arith.constant 12 : index
    %c0_29 = arith.constant 0 : index
    %31 = vector.load %arg1[%c0_28, %c12, %c0_29] : memref<1x102x128xbf16, #tpu.memory_space<vmem>>, vector<1x80x128xbf16>
    %32 = vector.shape_cast %31 : vector<1x80x128xbf16> to vector<80x128xbf16>
    %c5 = arith.constant 5 : index
    %c0_30 = arith.constant 0 : index
    %c0_31 = arith.constant 0 : index
    %33 = vector.load %arg2[%c5, %c0_30, %c0_31] : memref<9x128x128xbf16, #tpu.memory_space<vmem>>, vector<1x128x128xbf16>
    %34 = vector.shape_cast %33 : vector<1x128x128xbf16> to vector<128x128xbf16>
    %cst_32 = arith.constant dense<0.000000e+00> : vector<80x128xf32>
    %35 = tpu.matmul %32, %34, %cst_32 {dimension_numbers = #tpu.dot_dimension_numbers<[1], [0], [0], [1], [0, 0, 1, 1], [], []>} : vector<80x128xbf16>, vector<128x128xbf16>, vector<80x128xf32> -> vector<80x128xf32>
    %36 = arith.addf %30, %35 : vector<80x128xf32>
    %c0_33 = arith.constant 0 : index
    %c20 = arith.constant 20 : index
    %c0_34 = arith.constant 0 : index
    %37 = vector.load %arg1[%c0_33, %c20, %c0_34] : memref<1x102x128xbf16, #tpu.memory_space<vmem>>, vector<1x80x128xbf16>
    %38 = vector.shape_cast %37 : vector<1x80x128xbf16> to vector<80x128xbf16>
    %c6 = arith.constant 6 : index
    %c0_35 = arith.constant 0 : index
    %c0_36 = arith.constant 0 : index
    %39 = vector.load %arg2[%c6, %c0_35, %c0_36] : memref<9x128x128xbf16, #tpu.memory_space<vmem>>, vector<1x128x128xbf16>
    %40 = vector.shape_cast %39 : vector<1x128x128xbf16> to vector<128x128xbf16>
    %cst_37 = arith.constant dense<0.000000e+00> : vector<80x128xf32>
    %41 = tpu.matmul %38, %40, %cst_37 {dimension_numbers = #tpu.dot_dimension_numbers<[1], [0], [0], [1], [0, 0, 1, 1], [], []>} : vector<80x128xbf16>, vector<128x128xbf16>, vector<80x128xf32> -> vector<80x128xf32>
    %42 = arith.addf %36, %41 : vector<80x128xf32>
    %c0_38 = arith.constant 0 : index
    %c21 = arith.constant 21 : index
    %c0_39 = arith.constant 0 : index
    %43 = vector.load %arg1[%c0_38, %c21, %c0_39] : memref<1x102x128xbf16, #tpu.memory_space<vmem>>, vector<1x80x128xbf16>
    %44 = vector.shape_cast %43 : vector<1x80x128xbf16> to vector<80x128xbf16>
    %c7 = arith.constant 7 : index
    %c0_40 = arith.constant 0 : index
    %c0_41 = arith.constant 0 : index
    %45 = vector.load %arg2[%c7, %c0_40, %c0_41] : memref<9x128x128xbf16, #tpu.memory_space<vmem>>, vector<1x128x128xbf16>
    %46 = vector.shape_cast %45 : vector<1x128x128xbf16> to vector<128x128xbf16>
    %cst_42 = arith.constant dense<0.000000e+00> : vector<80x128xf32>
    %47 = tpu.matmul %44, %46, %cst_42 {dimension_numbers = #tpu.dot_dimension_numbers<[1], [0], [0], [1], [0, 0, 1, 1], [], []>} : vector<80x128xbf16>, vector<128x128xbf16>, vector<80x128xf32> -> vector<80x128xf32>
    %48 = arith.addf %42, %47 : vector<80x128xf32>
    %c0_43 = arith.constant 0 : index
    %c22 = arith.constant 22 : index
    %c0_44 = arith.constant 0 : index
    %49 = vector.load %arg1[%c0_43, %c22, %c0_44] : memref<1x102x128xbf16, #tpu.memory_space<vmem>>, vector<1x80x128xbf16>
    %50 = vector.shape_cast %49 : vector<1x80x128xbf16> to vector<80x128xbf16>
    %c8 = arith.constant 8 : index
    %c0_45 = arith.constant 0 : index
    %c0_46 = arith.constant 0 : index
    %51 = vector.load %arg2[%c8, %c0_45, %c0_46] : memref<9x128x128xbf16, #tpu.memory_space<vmem>>, vector<1x128x128xbf16>
    %52 = vector.shape_cast %51 : vector<1x128x128xbf16> to vector<128x128xbf16>
    %cst_47 = arith.constant dense<0.000000e+00> : vector<80x128xf32>
    %53 = tpu.matmul %50, %52, %cst_47 {dimension_numbers = #tpu.dot_dimension_numbers<[1], [0], [0], [1], [0, 0, 1, 1], [], []>} : vector<80x128xbf16>, vector<128x128xbf16>, vector<80x128xf32> -> vector<80x128xf32>
    %54 = arith.addf %48, %53 : vector<80x128xf32>
    %c0_48 = arith.constant 0 : index
    %c0_49 = arith.constant 0 : index
    %55 = vector.load %arg3[%c0_48, %c0_49] : memref<1x128xf32, #tpu.memory_space<vmem>>, vector<1x128xf32>
    %56 = vector.broadcast %55 : vector<1x128xf32> to vector<80x128xf32>
    %57 = arith.addf %54, %56 : vector<80x128xf32>
    %c0_50 = arith.constant 0 : index
    %c0_51 = arith.constant 0 : index
    %c0_52 = arith.constant 0 : index
    %58 = vector.load %arg4[%c0_50, %c0_51, %c0_52] : memref<1x80x128xbf16, #tpu.memory_space<vmem>>, vector<1x80x128xbf16>
    %59 = vector.shape_cast %58 : vector<1x80x128xbf16> to vector<80x128xbf16>
    %c0_53 = arith.constant 0 : index
    %c0_54 = arith.constant 0 : index
    %60 = vector.load %arg5[%c0_53, %c0_54] : memref<128x128xbf16, #tpu.memory_space<vmem>>, vector<128x128xbf16>
    %cst_55 = arith.constant dense<0.000000e+00> : vector<80x128xf32>
    %61 = tpu.matmul %59, %60, %cst_55 {dimension_numbers = #tpu.dot_dimension_numbers<[1], [0], [0], [1], [0, 0, 1, 1], [], []>} : vector<80x128xbf16>, vector<128x128xbf16>, vector<80x128xf32> -> vector<80x128xf32>
    %62 = arith.addf %57, %61 : vector<80x128xf32>
    %c0_56 = arith.constant 0 : index
    %c0_57 = arith.constant 0 : index
    %63 = vector.load %arg6[%c0_56, %c0_57] : memref<1x128xf32, #tpu.memory_space<vmem>>, vector<1x128xf32>
    %64 = vector.broadcast %63 : vector<1x128xf32> to vector<80x128xf32>
    %65 = arith.addf %62, %64 : vector<80x128xf32>
    %cst_58 = arith.constant 0.000000e+00 : f32
    %66 = vector.broadcast %cst_58 : f32 to vector<80x128xf32>
    %67 = arith.maximumf %65, %66 : vector<80x128xf32>
    %68 = arith.truncf %67 : vector<80x128xf32> to vector<80x128xbf16>
    %c0_59 = arith.constant 0 : index
    %c0_60 = arith.constant 0 : index
    %c0_61 = arith.constant 0 : index
    %69 = vector.load %arg7[%c0_59, %c0_60, %c0_61] : memref<1x80x128xbf16, #tpu.memory_space<vmem>>, vector<1x80x128xbf16>
    %70 = vector.shape_cast %69 : vector<1x80x128xbf16> to vector<80x128xbf16>
    %71 = vector.shape_cast %68 : vector<80x128xbf16> to vector<1x80x128xbf16>
    tpu.vector_store %arg7[%c0_59, %c0_60, %c0_61], %71 {strides = array<i32>} : memref<1x80x128xbf16, #tpu.memory_space<vmem>>, vector<1x80x128xbf16>,
    return
  }
  func.func @transform_0(%arg0: i32) -> (i32, i32, i32) {
    %c0_i32 = arith.constant 0 : i32
    %c0_i32_0 = arith.constant 0 : i32
    %c0_i32_1 = arith.constant 0 : i32
    return %arg0, %c0_i32, %c0_i32_0 : i32, i32, i32
  }
  func.func @transform_1(%arg0: i32) -> (i32, i32, i32) {
    %c0_i32 = arith.constant 0 : i32
    %c0_i32_0 = arith.constant 0 : i32
    %c0_i32_1 = arith.constant 0 : i32
    %c0_i32_2 = arith.constant 0 : i32
    return %c0_i32, %c0_i32_0, %c0_i32_1 : i32, i32, i32
  }
  func.func @transform_2(%arg0: i32) -> (i32, i32) {
    %c0_i32 = arith.constant 0 : i32
    %c0_i32_0 = arith.constant 0 : i32
    %c0_i32_1 = arith.constant 0 : i32
    return %c0_i32, %c0_i32_0 : i32, i32
  }
  func.func @transform_3(%arg0: i32) -> (i32, i32, i32) {
    %c0_i32 = arith.constant 0 : i32
    %c0_i32_0 = arith.constant 0 : i32
    %c0_i32_1 = arith.constant 0 : i32
    return %arg0, %c0_i32, %c0_i32_0 : i32, i32, i32
  }
  func.func @transform_4(%arg0: i32) -> (i32, i32) {
    %c0_i32 = arith.constant 0 : i32
    %c0_i32_0 = arith.constant 0 : i32
    %c0_i32_1 = arith.constant 0 : i32
    return %c0_i32, %c0_i32_0 : i32, i32
  }
  func.func @transform_5(%arg0: i32) -> (i32, i32) {
    %c0_i32 = arith.constant 0 : i32
    %c0_i32_0 = arith.constant 0 : i32
    %c0_i32_1 = arith.constant 0 : i32
    return %c0_i32, %c0_i32_0 : i32, i32
  }
  func.func @transform_6(%arg0: i32) -> (i32, i32, i32) {
    %c0_i32 = arith.constant 0 : i32
    %c0_i32_0 = arith.constant 0 : i32
    %c0_i32_1 = arith.constant 0 : i32
    return %arg0, %c0_i32, %c0_i32_0 : i32, i32, i32
  }
}

</mosaic_0001>

<llo_original>
// kernel: basic_block_forward.2
$region0: #{basic_block_forward.2}
  #allocation0 [shape = 'u32[]', space=smem, size = 0x4, offset = 0x4, fixed_abs, tag = 'smem constant byte address 0x4 - core index']
  #allocation1 [shape = 'u32[144,128]{1,0:T(1,128)}', space=vmem, size = 0x12000, scoped, tag = 'internal scratch']
  %s0 = inlined_call_operand.vmem [shape: bf16[128,128], index: 0, kind: input, shape index: {}]
  %s1 = inlined_call_operand.vmem [shape: bf16[128,128], index: 1, kind: input, shape index: {}]
  %s2 = inlined_call_operand.vmem [shape: f32[1,128], index: 2, kind: input, shape index: {}]
  %s3 = inlined_call_operand.vmem [shape: bf16[128,128], index: 3, kind: output, shape index: {}]
  %s4 = sld [smem:[#allocation0]]
  $region45: #{basic_block_forward.2} parent=0
    _
  %s6 = ssub.s32 1, %s4
  %s7 = scalar_select 0, %s6, %s4
  loop: start=0, step=1, limit=6
  $region2: #{basic_block_forward.2} parent=0 // loop_pre_header
    _
  $region3: #{basic_block_forward.2} parent=0 // loop_header
    %s9 = sphi 0, %s13
    %p10 = scmp.ge.s32.totalorder %s9, 6
    %s19 = sphi 0, %s21
    %s22 = sphi 0, %s19
    %s23 = sphi 0, %s22
    %s39 = sphi 0, %s23
    %s43 = sphi 0, %s43
    %s45 = sphi 0, %s43
    %s46 = sphi 0, %s45
    %s60 = sphi 0, %s46
    %s64 = sphi 0, %s64
    %s66 = sphi 0, %s64
    %s67 = sphi 0, %s66
    %s81 = sphi 0, %s67
    %s87 = sphi 0, %s89
    %s90 = sphi 0, %s87
    %s91 = sphi 0, %s90
    %s107 = sphi 0, %s91
  $region4: #{basic_block_forward.2} parent=0 // loop_header_branch
    %12 = sbr.rel (%p10) target = $region8
  $region5: #{basic_block_forward.2} parent=0 // loop_body
    %s14 = ssub.s32 %s9, 1
    %s15 = ssub.s32 %s9, 2
    %s16 = sadd.s32 %s9, 1
    %s17 = ssub.s32 %s9, %s16
    %p18 = scmp.eq.s32.totalorder %s17, 0
    %s20 = sadd.s32 %s19, 1
    %s21 = scalar_select %p18, %s19, %s20
    %p24 = pneg %p18
    %p25 = scmp.eq.s32.totalorder %s9, 3
    %p26 = por %p24, %p25
    %p27 = scmp.ne.s32.totalorder %s19, %s22
    %p28 = scmp.eq.s32.totalorder %s9, 0
    %p29 = por %p27, %p28
    %p30 = scmp.ne.s32.totalorder %s19, %s22
    %p31 = scmp.eq.s32.totalorder %s14, 3
    %p32 = por %p30, %p31
    %p33 = scmp.ne.s32.totalorder %s22, %s23
    %p34 = scmp.eq.s32.totalorder %s14, 0
    %p35 = por %p33, %p34
    %p36 = scmp.ne.s32.totalorder %s22, %s23
    %p37 = scmp.eq.s32.totalorder %s15, 3
    %p38 = por %p36, %p37
    %p40 = scmp.ne.s32.totalorder %s23, %s39
    %p41 = scmp.eq.s32.totalorder %s15, 0
    %p42 = por %p40, %p41
    %s44 = sadd.s32 %s43, 1
    %p47 = scmp.eq.s32.totalorder %s9, 3
    %p48 = scmp.ne.s32.totalorder %s43, %s45
    %p49 = scmp.eq.s32.totalorder %s9, 0
    %p50 = por %p48, %p49
    %p51 = scmp.ne.s32.totalorder %s43, %s45
    %p52 = scmp.eq.s32.totalorder %s14, 3
    %p53 = por %p51, %p52
    %p54 = scmp.ne.s32.totalorder %s45, %s46
    %p55 = scmp.eq.s32.totalorder %s14, 0
    %p56 = por %p54, %p55
    %p57 = scmp.ne.s32.totalorder %s45, %s46
    %p58 = scmp.eq.s32.totalorder %s15, 3
    %p59 = por %p57, %p58
    %p61 = scmp.ne.s32.totalorder %s46, %s60
    %p62 = scmp.eq.s32.totalorder %s15, 0
    %p63 = por %p61, %p62
    %s65 = sadd.s32 %s64, 1
    %p68 = scmp.eq.s32.totalorder %s9, 3
    %p69 = scmp.ne.s32.totalorder %s64, %s66
    %p70 = scmp.eq.s32.totalorder %s9, 0
    %p71 = por %p69, %p70
    %p72 = scmp.ne.s32.totalorder %s64, %s66
    %p73 = scmp.eq.s32.totalorder %s14, 3
    %p74 = por %p72, %p73
    %p75 = scmp.ne.s32.totalorder %s66, %s67
    %p76 = scmp.eq.s32.totalorder %s14, 0
    %p77 = por %p75, %p76
    %p78 = scmp.ne.s32.totalorder %s66, %s67
    %p79 = scmp.eq.s32.totalorder %s15, 3
    %p80 = por %p78, %p79
    %p82 = scmp.ne.s32.totalorder %s67, %s81
    %p83 = scmp.eq.s32.totalorder %s15, 0
    %p84 = por %p82, %p83
    %s85 = ssub.s32 %s9, %s16
    %p86 = scmp.eq.s32.totalorder %s85, 0
    %s88 = sadd.s32 %s87, 1
    %s89 = scalar_select %p86, %s87, %s88
    %p92 = pneg %p86
    %p93 = scmp.eq.s32.totalorder %s9, 3
    %p94 = por %p92, %p93
    %p95 = scmp.ne.s32.totalorder %s87, %s90
    %p96 = scmp.eq.s32.totalorder %s9, 0
    %p97 = por %p95, %p96
    %p98 = scmp.ne.s32.totalorder %s87, %s90
    %p99 = scmp.eq.s32.totalorder %s14, 3
    %p100 = por %p98, %p99
    %p101 = scmp.ne.s32.totalorder %s90, %s91
    %p102 = scmp.eq.s32.totalorder %s14, 0
    %p103 = por %p101, %p102
    %p104 = scmp.ne.s32.totalorder %s90, %s91
    %p105 = scmp.eq.s32.totalorder %s15, 3
    %p106 = por %p104, %p105
    %p108 = scmp.ne.s32.totalorder %s91, %s107
    %p109 = scmp.eq.s32.totalorder %s15, 0
    %p110 = por %p108, %p109
    %p111 = scmp.le.s32.totalorder 1, %s9
    %p112 = scmp.lt.s32.totalorder %s9, 5
    %p113 = pnand %p111, %p112
    %p114 = pneg %p113
    // Predicated region
    $region9: #{basic_block_forward.2} parent=5 // pred_check
      _
    $region10: #{basic_block_forward.2} parent=5 // pred_check_branch
      %116 = sbr.rel (%p113) target = $region12
    $region11: #{basic_block_forward.2} parent=5 // pred_region
      %s117 = ssub.s32 %s9, 1
      // Predicated region
      $region13: #{basic_block_forward.2} parent=11 // pred_check
        %p118 = pneg %p56
      $region14: #{basic_block_forward.2} parent=11 // pred_check_branch
        %120 = sbr.rel (%p118) target = $region16
      $region15: #{basic_block_forward.2} parent=11 // pred_region
        _
      $region16: #{basic_block_forward.2} parent=11 // pred_fallthru
        _
      // Predicated region
      $region17: #{basic_block_forward.2} parent=11 // pred_check
        %p121 = pneg %p77
      $region18: #{basic_block_forward.2} parent=11 // pred_check_branch
        %123 = sbr.rel (%p121) target = $region20
      $region19: #{basic_block_forward.2} parent=11 // pred_region
        _
      $region20: #{basic_block_forward.2} parent=11 // pred_fallthru
        _
    $region12: #{basic_block_forward.2} parent=5 // pred_fallthru
      _
    %p124 = scmp.lt.s32.totalorder %s9, 4
    // Predicated region
    $region21: #{basic_block_forward.2} parent=5 // pred_check
      %p125 = pneg %p124
    $region22: #{basic_block_forward.2} parent=5 // pred_check_branch
      %127 = sbr.rel (%p125) target = $region24
    $region23: #{basic_block_forward.2} parent=5 // pred_region
      // Predicated region
      $region25: #{basic_block_forward.2} parent=23 // pred_check
        %p128 = pneg %p29
      $region26: #{basic_block_forward.2} parent=23 // pred_check_branch
        %130 = sbr.rel (%p128) target = $region28
      $region27: #{basic_block_forward.2} parent=23 // pred_region
        %s131 = smul.u32 4, %s9
        %p132 = scmp.lt.s32.totalorder %s131, 15
        %s133 = scalar_select %p132, %s131, 15
        %s134 = smul.addr %s133, 4
        %s135 = scalar_lea.vmem %s0, %s134
        %s136 = smul.u32 4, %s9
      $region28: #{basic_block_forward.2} parent=23 // pred_fallthru
        _
    $region24: #{basic_block_forward.2} parent=5 // pred_fallthru
      _
    %p137 = scmp.le.s32.totalorder 1, %s9
    %p138 = scmp.lt.s32.totalorder %s9, 5
    %p139 = pnand %p137, %p138
    %p140 = pneg %p139
    // Predicated region
    $region29: #{basic_block_forward.2} parent=5 // pred_check
      _
    $region30: #{basic_block_forward.2} parent=5 // pred_check_branch
      %142 = sbr.rel (%p139) target = $region32
    $region31: #{basic_block_forward.2} parent=5 // pred_region
      %s143 = ssub.s32 %s9, 1
      %s144 = smul.u32 4, %s14
      %p145 = scmp.lt.s32.totalorder %s144, 15
      %s146 = scalar_select %p145, %s144, 15
      %s147 = smul.addr %s146, 4
      %s148 = scalar_lea.vmem %s0, %s147
      %p149 = pneg %p35
      %p150 = pneg %p32
      %p151 = pneg %p56
      %p152 = pneg %p53
      %p153 = pneg %p77
      %p154 = pneg %p74
      %p155 = pneg %p103
      %p156 = pneg %p100
      %s157 = smul.u32 4, %s14
      %p158 = scmp.lt.s32.totalorder %s157, 15
      %s159 = scalar_select %p158, %s157, 15
      %s160 = smul.addr %s159, 4
      %s161 = scalar_lea.vmem %s3, %s160
      %s162 = smul.u32 4, %s14
      %p163 = scmp.lt.s32.totalorder %s162, 15
      %s164 = scalar_select %p163, %s162, 15
      %s165 = smul.addr %s164, 4
      %s166 = scalar_lea.vmem %s0, %s165
      %s167 = smul.u32 4, %s14
      %s168 = smul.u32 4, %s14
      %p169 = scmp.lt.s32.totalorder %s168, 15
      %s170 = scalar_select %p169, %s168, 15
      %s171 = smul.addr %s170, 4
      %s172 = scalar_lea.vmem %s3, %s171
      %s173 = smul.u32 4, %s14
      %v175 = vld [vmem:[%s166] sm:$0xf]
      %v176 = vld [vmem:[%s166 + $0x4] sm:$0xf]
      %v177 = vld [vmem:[%s166 + $0x8] sm:$0xf]
      %v178 = vld [vmem:[%s166 + $0xc] sm:$0xf]
      %v179 = vld [vmem:[%s1] sm:$0xf]
      %v180 = vld [vmem:[%s1 + $0x4] sm:$0xf]
      %v181 = vld [vmem:[%s1 + $0x8] sm:$0xf]
      %v182 = vld [vmem:[%s1 + $0xc] sm:$0xf]
      %v183 = vld [vmem:[%s1 + $0x10] sm:$0xf]
      %v184 = vld [vmem:[%s1 + $0x14] sm:$0xf]
      %v185 = vld [vmem:[%s1 + $0x18] sm:$0xf]
      %v186 = vld [vmem:[%s1 + $0x1c] sm:$0xf]
      %v187 = vld [vmem:[%s1 + $0x20] sm:$0xf]
      %v188 = vld [vmem:[%s1 + $0x24] sm:$0xf]
      %v189 = vld [vmem:[%s1 + $0x28] sm:$0xf]
      %v190 = vld [vmem:[%s1 + $0x2c] sm:$0xf]
      %v191 = vld [vmem:[%s1 + $0x30] sm:$0xf]
      %v192 = vld [vmem:[%s1 + $0x34] sm:$0xf]
      %v193 = vld [vmem:[%s1 + $0x38] sm:$0xf]
      %v194 = vld [vmem:[%s1 + $0x3c] sm:$0xf]
      %v195 = vld [vmem:[%s2] sm:$0x1]
      %v197 = vlaneseq
      %v198 = vshrl.u32 %v197, 7
      %v199 = vsub.s32 0, %v198
      %v200 = vrot.slane %v195, %v199
      %v206 = vunpack.c.l.b16 %v175
      %v207 = vunpack.c.l.b16 %v176
      %v208 = vunpack.c.l.b16 %v177
      %v209 = vunpack.c.l.b16 %v178
      %v210 = vpack.c.b16 %v207, %v206
      %v211 = vpack.c.b16 %v209, %v208
      %v230 = vunpack.c.l.b16 %v179
      %v231 = vunpack.c.l.b16 %v180
      %v232 = vunpack.c.l.b16 %v181
      %v233 = vunpack.c.l.b16 %v182
      %v234 = vunpack.c.l.b16 %v183
      %v235 = vunpack.c.l.b16 %v184
      %v236 = vunpack.c.l.b16 %v185
      %v237 = vunpack.c.l.b16 %v186
      %v238 = vunpack.c.l.b16 %v187
      %v239 = vunpack.c.l.b16 %v188
      %v240 = vunpack.c.l.b16 %v189
      %v241 = vunpack.c.l.b16 %v190
      %v242 = vunpack.c.l.b16 %v191
      %v243 = vunpack.c.l.b16 %v192
      %v244 = vunpack.c.l.b16 %v193
      %v245 = vunpack.c.l.b16 %v194
      %v246 = vpack.c.b16 %v231, %v230
      %v247 = vpack.c.b16 %v233, %v232
      %v248 = vpack.c.b16 %v235, %v234
      %v249 = vpack.c.b16 %v237, %v236
      %v250 = vpack.c.b16 %v239, %v238
      %v251 = vpack.c.b16 %v241, %v240
      %v252 = vpack.c.b16 %v243, %v242
      %v253 = vpack.c.b16 %v245, %v244
      %262 = vmatprep.subr.bf16.mxu0 0
      %263 = vmatpush1.bf16.msra.mxu0 %v253
      %264 = vmatprep.subr.bf16.mxu0 0
      %265 = vmatpush1.bf16.msra.mxu0 %v252
      %266 = vmatprep.subr.bf16.mxu0 0
      %267 = vmatpush1.bf16.msra.mxu0 %v251
      %268 = vmatprep.subr.bf16.mxu0 0
      %269 = vmatpush1.bf16.msra.mxu0 %v250
      %270 = vmatprep.subr.bf16.mxu0 0
      %271 = vmatpush1.bf16.msra.mxu0 %v249
      %272 = vmatprep.subr.bf16.mxu0 0
      %273 = vmatpush1.bf16.msra.mxu0 %v248
      %274 = vmatprep.subr.bf16.mxu0 0
      %275 = vmatpush1.bf16.msra.mxu0 %v247
      %276 = vmatprep.subr.bf16.mxu0 0
      %277 = vmatpush1.bf16.msra.mxu0 %v246
      %278 = vmatprep.subr.bf16.mxu0 0
      %279 = vmatpush2.bf16.msra.mxu0 0
      %280 = vmatprep.subr.bf16.mxu0 0
      %281 = vmatpush2.bf16.msra.mxu0 0
      %282 = vmatprep.subr.bf16.mxu0 0
      %283 = vmatpush2.bf16.msra.mxu0 0
      %284 = vmatprep.subr.bf16.mxu0 0
      %285 = vmatpush2.bf16.msra.mxu0 0
      %286 = vmatprep.subr.bf16.mxu0 0
      %287 = vmatpush2.bf16.msra.mxu0 0
      %288 = vmatprep.subr.bf16.mxu0 0
      %289 = vmatpush2.bf16.msra.mxu0 0
      %290 = vmatprep.subr.bf16.mxu0 0
      %291 = vmatpush2.bf16.msra.mxu0 0
      %292 = vmatprep.subr.bf16.mxu0 0
      %293 = vmatpush2.bf16.msra.mxu0 0
      %294 = vmatprep.mubr.bf16.mxu0 0
      %295 = vmatmul.mubr.bf16.gmra.mxu0 %v210
      %v296 = vpop.f32.mrf.mxu0
      %v297 = vadd.f32 %v200, %v296
      %v298 = vpop.f32.mrf.mxu0
      %v299 = vpop.f32.mrf.mxu0
      %v300 = vadd.f32 %v200, %v299
      %v301 = vpop.f32.mrf.mxu0
      %302 = vmatprep.mubr.bf16.mxu0 0
      %303 = vmatmul.mubr.bf16.gmra.mxu0 %v211
      %v304 = vpop.f32.mrf.mxu0
      %v305 = vadd.f32 %v200, %v304
      %v306 = vpop.f32.mrf.mxu0
      %v307 = vpop.f32.mrf.mxu0
      %v308 = vadd.f32 %v200, %v307
      %v309 = vpop.f32.mrf.mxu0
      %310 = vdwg.mxu0
      %v311 = vmax.f32 %v297, 0.0
      %v312 = vmax.f32 %v300, 0.0
      %v313 = vmax.f32 %v305, 0.0
      %v314 = vmax.f32 %v308, 0.0
      %v315 = vpack.c.bf16 %v312, %v311
      %v316 = vpack.c.bf16 %v314, %v313
      %v319 = vunpack.c.l.b16 %v315
      %v320 = vunpack.c.h.b16 %v315
      %v321 = vunpack.c.l.b16 %v316
      %v322 = vunpack.c.h.b16 %v316
      %v323 = vpack.c.b16 %v319, %v319
      %v324 = vpack.c.b16 %v320, %v320
      %v325 = vpack.c.b16 %v321, %v321
      %v326 = vpack.c.b16 %v322, %v322
      %331 = vst [vmem:[%s172] sm:$0xf] %v323
      %332 = vst [vmem:[%s172 + $0x4] sm:$0xf] %v324
      %333 = vst [vmem:[%s172 + $0x8] sm:$0xf] %v325
      %334 = vst [vmem:[%s172 + $0xc] sm:$0xf] %v326
      %s335 = smul.u32 4, %s14
      %p336 = scmp.lt.s32.totalorder %s335, 15
      %s337 = scalar_select %p336, %s335, 15
      %s338 = smul.addr %s337, 4
      %s339 = scalar_lea.vmem %s3, %s338
      // Predicated region
      $region33: #{basic_block_forward.2} parent=31 // pred_check
        %p340 = pneg %p100
      $region34: #{basic_block_forward.2} parent=31 // pred_check_branch
        %342 = sbr.rel (%p340) target = $region36
      $region35: #{basic_block_forward.2} parent=31 // pred_region
        %s343 = smul.u32 4, %s14
      $region36: #{basic_block_forward.2} parent=31 // pred_fallthru
        _
    $region32: #{basic_block_forward.2} parent=5 // pred_fallthru
      _
    %p344 = scmp.le.s32.totalorder 2, %s9
    // Predicated region
    $region37: #{basic_block_forward.2} parent=5 // pred_check
      %p345 = pneg %p344
    $region38: #{basic_block_forward.2} parent=5 // pred_check_branch
      %347 = sbr.rel (%p345) target = $region40
    $region39: #{basic_block_forward.2} parent=5 // pred_region
      %s348 = ssub.s32 %s9, 2
      // Predicated region
      $region41: #{basic_block_forward.2} parent=39 // pred_check
        %p349 = pneg %p106
      $region42: #{basic_block_forward.2} parent=39 // pred_check_branch
        %351 = sbr.rel (%p349) target = $region44
      $region43: #{basic_block_forward.2} parent=39 // pred_region
        %s352 = smul.u32 4, %s15
        %p353 = scmp.lt.s32.totalorder %s352, 15
        %s354 = scalar_select %p353, %s352, 15
        %s355 = smul.addr %s354, 4
        %s356 = scalar_lea.vmem %s3, %s355
      $region44: #{basic_block_forward.2} parent=39 // pred_fallthru
        _
    $region40: #{basic_block_forward.2} parent=5 // pred_fallthru
      _
  $region6: #{basic_block_forward.2} parent=0 // loop_footer
    %s13 = sadd.s32 1, %s9
  $region7: #{basic_block_forward.2} parent=0 // loop_footer_branch
    %8 = sbr.rel target = $region3
  $region8: #{basic_block_forward.2} parent=0 // loop_exit
    _

// kernel: basic_block_forward.3
$region0: #{basic_block_forward.3}
  #allocation0 [shape = 'u32[]', space=smem, size = 0x4, offset = 0x4, fixed_abs, tag = 'smem constant byte address 0x4 - core index']
  #allocation1 [shape = 'u32[144,128]{1,0:T(1,128)}', space=vmem, size = 0x12000, scoped, tag = 'internal scratch']
  %s0 = inlined_call_operand.vmem [shape: bf16[2,102,128], index: 0, kind: input, shape index: {}]
  %s1 = inlined_call_operand.vmem [shape: bf16[9,128,128], index: 1, kind: input, shape index: {}]
  %s2 = inlined_call_operand.vmem [shape: f32[1,128], index: 2, kind: input, shape index: {}]
  %s3 = inlined_call_operand.vmem [shape: bf16[2,80,128], index: 3, kind: input, shape index: {}]
  %s4 = inlined_call_operand.vmem [shape: bf16[128,128], index: 4, kind: input, shape index: {}]
  %s5 = inlined_call_operand.vmem [shape: f32[1,128], index: 5, kind: input, shape index: {}]
  %s6 = inlined_call_operand.vmem [shape: bf16[2,80,128], index: 6, kind: output, shape index: {}]
  %s7 = sld [smem:[#allocation0]]
  $region57: #{basic_block_forward.3} parent=0
    _
  %s9 = ssub.s32 1, %s7
  %s10 = scalar_select 0, %s9, %s7
  loop: start=0, step=1, limit=4
  $region2: #{basic_block_forward.3} parent=0 // loop_pre_header
    _
  $region3: #{basic_block_forward.3} parent=0 // loop_header
    %s12 = sphi 0, %s16
    %p13 = scmp.ge.s32.totalorder %s12, 4
    %s22 = sphi 0, %s24
    %s25 = sphi 0, %s22
    %s26 = sphi 0, %s25
    %s42 = sphi 0, %s26
    %s46 = sphi 0, %s46
    %s48 = sphi 0, %s46
    %s49 = sphi 0, %s48
    %s63 = sphi 0, %s49
    %s67 = sphi 0, %s67
    %s69 = sphi 0, %s67
    %s70 = sphi 0, %s69
    %s84 = sphi 0, %s70
    %s90 = sphi 0, %s92
    %s93 = sphi 0, %s90
    %s94 = sphi 0, %s93
    %s110 = sphi 0, %s94
    %s114 = sphi 0, %s114
    %s116 = sphi 0, %s114
    %s117 = sphi 0, %s116
    %s131 = sphi 0, %s117
    %s135 = sphi 0, %s135
    %s137 = sphi 0, %s135
    %s138 = sphi 0, %s137
    %s152 = sphi 0, %s138
    %s158 = sphi 0, %s160
    %s161 = sphi 0, %s158
    %s162 = sphi 0, %s161
    %s178 = sphi 0, %s162
  $region4: #{basic_block_forward.3} parent=0 // loop_header_branch
    %15 = sbr.rel (%p13) target = $region8
  $region5: #{basic_block_forward.3} parent=0 // loop_body
    %s17 = ssub.s32 %s12, 1
    %s18 = ssub.s32 %s12, 2
    %s19 = sadd.s32 %s12, 1
    %s20 = ssub.s32 %s12, %s19
    %p21 = scmp.eq.s32.totalorder %s20, 0
    %s23 = sadd.s32 %s22, 1
    %s24 = scalar_select %p21, %s22, %s23
    %p27 = pneg %p21
    %p28 = scmp.eq.s32.totalorder %s12, 1
    %p29 = por %p27, %p28
    %p30 = scmp.ne.s32.totalorder %s22, %s25
    %p31 = scmp.eq.s32.totalorder %s12, 0
    %p32 = por %p30, %p31
    %p33 = scmp.ne.s32.totalorder %s22, %s25
    %p34 = scmp.eq.s32.totalorder %s17, 1
    %p35 = por %p33, %p34
    %p36 = scmp.ne.s32.totalorder %s25, %s26
    %p37 = scmp.eq.s32.totalorder %s17, 0
    %p38 = por %p36, %p37
    %p39 = scmp.ne.s32.totalorder %s25, %s26
    %p40 = scmp.eq.s32.totalorder %s18, 1
    %p41 = por %p39, %p40
    %p43 = scmp.ne.s32.totalorder %s26, %s42
    %p44 = scmp.eq.s32.totalorder %s18, 0
    %p45 = por %p43, %p44
    %s47 = sadd.s32 %s46, 1
    %p50 = scmp.eq.s32.totalorder %s12, 1
    %p51 = scmp.ne.s32.totalorder %s46, %s48
    %p52 = scmp.eq.s32.totalorder %s12, 0
    %p53 = por %p51, %p52
    %p54 = scmp.ne.s32.totalorder %s46, %s48
    %p55 = scmp.eq.s32.totalorder %s17, 1
    %p56 = por %p54, %p55
    %p57 = scmp.ne.s32.totalorder %s48, %s49
    %p58 = scmp.eq.s32.totalorder %s17, 0
    %p59 = por %p57, %p58
    %p60 = scmp.ne.s32.totalorder %s48, %s49
    %p61 = scmp.eq.s32.totalorder %s18, 1
    %p62 = por %p60, %p61
    %p64 = scmp.ne.s32.totalorder %s49, %s63
    %p65 = scmp.eq.s32.totalorder %s18, 0
    %p66 = por %p64, %p65
    %s68 = sadd.s32 %s67, 1
    %p71 = scmp.eq.s32.totalorder %s12, 1
    %p72 = scmp.ne.s32.totalorder %s67, %s69
    %p73 = scmp.eq.s32.totalorder %s12, 0
    %p74 = por %p72, %p73
    %p75 = scmp.ne.s32.totalorder %s67, %s69
    %p76 = scmp.eq.s32.totalorder %s17, 1
    %p77 = por %p75, %p76
    %p78 = scmp.ne.s32.totalorder %s69, %s70
    %p79 = scmp.eq.s32.totalorder %s17, 0
    %p80 = por %p78, %p79
    %p81 = scmp.ne.s32.totalorder %s69, %s70
    %p82 = scmp.eq.s32.totalorder %s18, 1
    %p83 = por %p81, %p82
    %p85 = scmp.ne.s32.totalorder %s70, %s84
    %p86 = scmp.eq.s32.totalorder %s18, 0
    %p87 = por %p85, %p86
    %s88 = ssub.s32 %s12, %s19
    %p89 = scmp.eq.s32.totalorder %s88, 0
    %s91 = sadd.s32 %s90, 1
    %s92 = scalar_select %p89, %s90, %s91
    %p95 = pneg %p89
    %p96 = scmp.eq.s32.totalorder %s12, 1
    %p97 = por %p95, %p96
    %p98 = scmp.ne.s32.totalorder %s90, %s93
    %p99 = scmp.eq.s32.totalorder %s12, 0
    %p100 = por %p98, %p99
    %p101 = scmp.ne.s32.totalorder %s90, %s93
    %p102 = scmp.eq.s32.totalorder %s17, 1
    %p103 = por %p101, %p102
    %p104 = scmp.ne.s32.totalorder %s93, %s94
    %p105 = scmp.eq.s32.totalorder %s17, 0
    %p106 = por %p104, %p105
    %p107 = scmp.ne.s32.totalorder %s93, %s94
    %p108 = scmp.eq.s32.totalorder %s18, 1
    %p109 = por %p107, %p108
    %p111 = scmp.ne.s32.totalorder %s94, %s110
    %p112 = scmp.eq.s32.totalorder %s18, 0
    %p113 = por %p111, %p112
    %s115 = sadd.s32 %s114, 1
    %p118 = scmp.eq.s32.totalorder %s12, 1
    %p119 = scmp.ne.s32.totalorder %s114, %s116
    %p120 = scmp.eq.s32.totalorder %s12, 0
    %p121 = por %p119, %p120
    %p122 = scmp.ne.s32.totalorder %s114, %s116
    %p123 = scmp.eq.s32.totalorder %s17, 1
    %p124 = por %p122, %p123
    %p125 = scmp.ne.s32.totalorder %s116, %s117
    %p126 = scmp.eq.s32.totalorder %s17, 0
    %p127 = por %p125, %p126
    %p128 = scmp.ne.s32.totalorder %s116, %s117
    %p129 = scmp.eq.s32.totalorder %s18, 1
    %p130 = por %p128, %p129
    %p132 = scmp.ne.s32.totalorder %s117, %s131
    %p133 = scmp.eq.s32.totalorder %s18, 0
    %p134 = por %p132, %p133
    %s136 = sadd.s32 %s135, 1
    %p139 = scmp.eq.s32.totalorder %s12, 1
    %p140 = scmp.ne.s32.totalorder %s135, %s137
    %p141 = scmp.eq.s32.totalorder %s12, 0
    %p142 = por %p140, %p141
    %p143 = scmp.ne.s32.totalorder %s135, %s137
    %p144 = scmp.eq.s32.totalorder %s17, 1
    %p145 = por %p143, %p144
    %p146 = scmp.ne.s32.totalorder %s137, %s138
    %p147 = scmp.eq.s32.totalorder %s17, 0
    %p148 = por %p146, %p147
    %p149 = scmp.ne.s32.totalorder %s137, %s138
    %p150 = scmp.eq.s32.totalorder %s18, 1
    %p151 = por %p149, %p150
    %p153 = scmp.ne.s32.totalorder %s138, %s152
    %p154 = scmp.eq.s32.totalorder %s18, 0
    %p155 = por %p153, %p154
    %s156 = ssub.s32 %s12, %s19
    %p157 = scmp.eq.s32.totalorder %s156, 0
    %s159 = sadd.s32 %s158, 1
    %s160 = scalar_select %p157, %s158, %s159
    %p163 = pneg %p157
    %p164 = scmp.eq.s32.totalorder %s12, 1
    %p165 = por %p163, %p164
    %p166 = scmp.ne.s32.totalorder %s158, %s161
    %p167 = scmp.eq.s32.totalorder %s12, 0
    %p168 = por %p166, %p167
    %p169 = scmp.ne.s32.totalorder %s158, %s161
    %p170 = scmp.eq.s32.totalorder %s17, 1
    %p171 = por %p169, %p170
    %p172 = scmp.ne.s32.totalorder %s161, %s162
    %p173 = scmp.eq.s32.totalorder %s17, 0
    %p174 = por %p172, %p173
    %p175 = scmp.ne.s32.totalorder %s161, %s162
    %p176 = scmp.eq.s32.totalorder %s18, 1
    %p177 = por %p175, %p176
    %p179 = scmp.ne.s32.totalorder %s162, %s178
    %p180 = scmp.eq.s32.totalorder %s18, 0
    %p181 = por %p179, %p180
    %p182 = scmp.le.s32.totalorder 1, %s12
    %p183 = scmp.lt.s32.totalorder %s12, 3
    %p184 = pnand %p182, %p183
    %p185 = pneg %p184
    // Predicated region
    $region9: #{basic_block_forward.3} parent=5 // pred_check
      _
    $region10: #{basic_block_forward.3} parent=5 // pred_check_branch
      %187 = sbr.rel (%p184) target = $region12
    $region11: #{basic_block_forward.3} parent=5 // pred_region
      %s188 = ssub.s32 %s12, 1
      // Predicated region
      $region13: #{basic_block_forward.3} parent=11 // pred_check
        %p189 = pneg %p59
      $region14: #{basic_block_forward.3} parent=11 // pred_check_branch
        %191 = sbr.rel (%p189) target = $region16
      $region15: #{basic_block_forward.3} parent=11 // pred_region
        _
      $region16: #{basic_block_forward.3} parent=11 // pred_fallthru
        _
      // Predicated region
      $region17: #{basic_block_forward.3} parent=11 // pred_check
        %p192 = pneg %p80
      $region18: #{basic_block_forward.3} parent=11 // pred_check_branch
        %194 = sbr.rel (%p192) target = $region20
      $region19: #{basic_block_forward.3} parent=11 // pred_region
        _
      $region20: #{basic_block_forward.3} parent=11 // pred_fallthru
        _
      // Predicated region
      $region21: #{basic_block_forward.3} parent=11 // pred_check
        %p195 = pneg %p127
      $region22: #{basic_block_forward.3} parent=11 // pred_check_branch
        %197 = sbr.rel (%p195) target = $region24
      $region23: #{basic_block_forward.3} parent=11 // pred_region
        _
      $region24: #{basic_block_forward.3} parent=11 // pred_fallthru
        _
      // Predicated region
      $region25: #{basic_block_forward.3} parent=11 // pred_check
        %p198 = pneg %p148
      $region26: #{basic_block_forward.3} parent=11 // pred_check_branch
        %200 = sbr.rel (%p198) target = $region28
      $region27: #{basic_block_forward.3} parent=11 // pred_region
        _
      $region28: #{basic_block_forward.3} parent=11 // pred_fallthru
        _
    $region12: #{basic_block_forward.3} parent=5 // pred_fallthru
      _
    %p201 = scmp.lt.s32.totalorder %s12, 2
    // Predicated region
    $region29: #{basic_block_forward.3} parent=5 // pred_check
      %p202 = pneg %p201
    $region30: #{basic_block_forward.3} parent=5 // pred_check_branch
      %204 = sbr.rel (%p202) target = $region32
    $region31: #{basic_block_forward.3} parent=5 // pred_region
      // Predicated region
      $region33: #{basic_block_forward.3} parent=31 // pred_check
        %p205 = pneg %p32
      $region34: #{basic_block_forward.3} parent=31 // pred_check_branch
        %207 = sbr.rel (%p205) target = $region36
      $region35: #{basic_block_forward.3} parent=31 // pred_region
        %p208 = scmp.lt.s32.totalorder %s12, 1
        %s209 = scalar_select %p208, %s12, 1
        %s210 = smul.addr %s209, 13
        %s211 = smul.addr %s210, 4
        %s212 = scalar_lea.vmem %s0, %s211
      $region36: #{basic_block_forward.3} parent=31 // pred_fallthru
        _
      // Predicated region
      $region37: #{basic_block_forward.3} parent=31 // pred_check
        %p213 = pneg %p100
      $region38: #{basic_block_forward.3} parent=31 // pred_check_branch
        %215 = sbr.rel (%p213) target = $region40
      $region39: #{basic_block_forward.3} parent=31 // pred_region
        %p216 = scmp.lt.s32.totalorder %s12, 1
        %s217 = scalar_select %p216, %s12, 1
        %s218 = smul.addr %s217, 10
        %s219 = smul.addr %s218, 4
        %s220 = scalar_lea.vmem %s3, %s219
      $region40: #{basic_block_forward.3} parent=31 // pred_fallthru
        _
    $region32: #{basic_block_forward.3} parent=5 // pred_fallthru
      _
    %p221 = scmp.le.s32.totalorder 1, %s12
    %p222 = scmp.lt.s32.totalorder %s12, 3
    %p223 = pnand %p221, %p222
    %p224 = pneg %p223
    // Predicated region
    $region41: #{basic_block_forward.3} parent=5 // pred_check
      _
    $region42: #{basic_block_forward.3} parent=5 // pred_check_branch
      %226 = sbr.rel (%p223) target = $region44
    $region43: #{basic_block_forward.3} parent=5 // pred_region
      %s227 = ssub.s32 %s12, 1
      %p228 = scmp.lt.s32.totalorder %s17, 1
      %s229 = scalar_select %p228, %s17, 1
      %s230 = smul.addr %s229, 13
      %s231 = smul.addr %s230, 4
      %s232 = scalar_lea.vmem %s0, %s231
      %p233 = pneg %p38
      %p234 = pneg %p35
      %p235 = pneg %p59
      %p236 = pneg %p56
      %p237 = pneg %p80
      %p238 = pneg %p77
      %p239 = scmp.lt.s32.totalorder %s17, 1
      %s240 = scalar_select %p239, %s17, 1
      %s241 = smul.addr %s240, 10
      %s242 = smul.addr %s241, 4
      %s243 = scalar_lea.vmem %s3, %s242
      %p244 = pneg %p106
      %p245 = pneg %p103
      %p246 = pneg %p127
      %p247 = pneg %p124
      %p248 = pneg %p148
      %p249 = pneg %p145
      %p250 = pneg %p174
      %p251 = pneg %p171
      %p252 = scmp.lt.s32.totalorder %s17, 1
      %s253 = scalar_select %p252, %s17, 1
      %s254 = smul.addr %s253, 10
      %s255 = smul.addr %s254, 4
      %s256 = scalar_lea.vmem %s6, %s255
      %p257 = scmp.lt.s32.totalorder %s17, 1
      %s258 = scalar_select %p257, %s17, 1
      %s259 = smul.addr %s258, 13
      %s260 = smul.addr %s259, 4
      %s261 = scalar_lea.vmem %s0, %s260
      %p262 = scmp.lt.s32.totalorder %s17, 1
      %s263 = scalar_select %p262, %s17, 1
      %s264 = smul.addr %s263, 10
      %s265 = smul.addr %s264, 4
      %s266 = scalar_lea.vmem %s3, %s265
      %p267 = scmp.lt.s32.totalorder %s17, 1
      %s268 = scalar_select %p267, %s17, 1
      %s269 = smul.addr %s268, 10
      %s270 = smul.addr %s269, 4
      %s271 = scalar_lea.vmem %s6, %s270
      %v273 = vld [vmem:[%s261] sm:$0xf]
      %v274 = vld [vmem:[%s261 + $0x4] sm:$0xf]
      %v275 = vld [vmem:[%s261 + $0x8] sm:$0xf]
      %v276 = vld [vmem:[%s261 + $0xc] sm:$0xf]
      %v277 = vld [vmem:[%s261 + $0x10] sm:$0xf]
      %v278 = vld [vmem:[%s261 + $0x14] sm:$0xf]
      %v279 = vld [vmem:[%s261 + $0x18] sm:$0xf]
      %v280 = vld [vmem:[%s261 + $0x1c] sm:$0xf]
      %v281 = vld [vmem:[%s261 + $0x20] sm:$0xf]
      %v282 = vld [vmem:[%s261 + $0x24] sm:$0xf]
      %v283 = vld [vmem:[%s1] sm:$0xf]
      %v284 = vld [vmem:[%s1 + $0x4] sm:$0xf]
      %v285 = vld [vmem:[%s1 + $0x8] sm:$0xf]
      %v286 = vld [vmem:[%s1 + $0xc] sm:$0xf]
      %v287 = vld [vmem:[%s1 + $0x10] sm:$0xf]
      %v288 = vld [vmem:[%s1 + $0x14] sm:$0xf]
      %v289 = vld [vmem:[%s1 + $0x18] sm:$0xf]
      %v290 = vld [vmem:[%s1 + $0x1c] sm:$0xf]
      %v291 = vld [vmem:[%s1 + $0x20] sm:$0xf]
      %v292 = vld [vmem:[%s1 + $0x24] sm:$0xf]
      %v293 = vld [vmem:[%s1 + $0x28] sm:$0xf]
      %v294 = vld [vmem:[%s1 + $0x2c] sm:$0xf]
      %v295 = vld [vmem:[%s1 + $0x30] sm:$0xf]
      %v296 = vld [vmem:[%s1 + $0x34] sm:$0xf]
      %v297 = vld [vmem:[%s1 + $0x38] sm:$0xf]
      %v298 = vld [vmem:[%s1 + $0x3c] sm:$0xf]
      %v299 = vld [vmem:[%s261 + $0x28] sm:$0x1]
      %s300 = scalar_lea.vmem %s1, 64
      %v301 = vld [vmem:[%s300] sm:$0xf]
      %v302 = vld [vmem:[%s300 + $0x4] sm:$0xf]
      %v303 = vld [vmem:[%s300 + $0x8] sm:$0xf]
      %v304 = vld [vmem:[%s300 + $0xc] sm:$0xf]
      %v305 = vld [vmem:[%s300 + $0x10] sm:$0xf]
      %v306 = vld [vmem:[%s300 + $0x14] sm:$0xf]
      %v307 = vld [vmem:[%s300 + $0x18] sm:$0xf]
      %v308 = vld [vmem:[%s300 + $0x1c] sm:$0xf]
      %v309 = vld [vmem:[%s300 + $0x20] sm:$0xf]
      %v310 = vld [vmem:[%s300 + $0x24] sm:$0xf]
      %v311 = vld [vmem:[%s300 + $0x28] sm:$0xf]
      %v312 = vld [vmem:[%s300 + $0x2c] sm:$0xf]
      %v313 = vld [vmem:[%s300 + $0x30] sm:$0xf]
      %v314 = vld [vmem:[%s300 + $0x34] sm:$0xf]
      %v315 = vld [vmem:[%s300 + $0x38] sm:$0xf]
      %v316 = vld [vmem:[%s300 + $0x3c] sm:$0xf]
      %v328 = vunpack.c.l.b16 %v273
      %v329 = vunpack.c.l.b16 %v274
      %v330 = vunpack.c.l.b16 %v275
      %v331 = vunpack.c.l.b16 %v276
      %v332 = vunpack.c.l.b16 %v277
      %v333 = vunpack.c.l.b16 %v278
      %v334 = vunpack.c.l.b16 %v279
      %v335 = vunpack.c.l.b16 %v280
      %v336 = vunpack.c.l.b16 %v281
      %v337 = vunpack.c.l.b16 %v282
      %v338 = vunpack.c.l.b16 %v299
      %v339 = vpack.c.b16 %v329, %v328
      %v340 = vpack.c.b16 %v331, %v330
      %v341 = vpack.c.b16 %v333, %v332
      %v342 = vpack.c.b16 %v335, %v334
      %v343 = vpack.c.b16 %v337, %v336
      %v344 = vpack.c.b16 %v338, %v338
      %vm345 = vsmask.f32 7424
      %v347 = vshrl.u32 %v339, 16
      %v349 = vshll.u32 %v339, 16
      %v351 = vrot.slane %v349, 1
      %v352 = vor.u32 %v347, %v351
      %v354 = vshll.u32 %v340, 16
      %v356 = vrot.slane %v354, 1
      %v357 = vsel %vm345, %v352, %v356
      %v358 = vshrl.u32 %v340, 16
      %v360 = vor.u32 %v358, %v356
      %v362 = vshll.u32 %v341, 16
      %v364 = vrot.slane %v362, 1
      %v365 = vsel %vm345, %v360, %v364
      %v366 = vshrl.u32 %v341, 16
      %v368 = vor.u32 %v366, %v364
      %v370 = vshll.u32 %v342, 16
      %v372 = vrot.slane %v370, 1
      %v373 = vsel %vm345, %v368, %v372
      %v374 = vshrl.u32 %v342, 16
      %v376 = vor.u32 %v374, %v372
      %v378 = vshll.u32 %v343, 16
      %v380 = vrot.slane %v378, 1
      %v381 = vsel %vm345, %v376, %v380
      %v382 = vshrl.u32 %v343, 16
      %v384 = vor.u32 %v382, %v380
      %v386 = vshll.u32 %v344, 16
      %v388 = vrot.slane %v386, 1
      %v389 = vsel %vm345, %v384, %v388
      %v411 = vunpack.c.l.b16 %v301
      %v412 = vunpack.c.l.b16 %v302
      %v413 = vunpack.c.l.b16 %v303
      %v414 = vunpack.c.l.b16 %v304
      %v415 = vunpack.c.l.b16 %v305
      %v416 = vunpack.c.l.b16 %v306
      %v417 = vunpack.c.l.b16 %v307
      %v418 = vunpack.c.l.b16 %v308
      %v419 = vunpack.c.l.b16 %v309
      %v420 = vunpack.c.l.b16 %v310
      %v421 = vunpack.c.l.b16 %v311
      %v422 = vunpack.c.l.b16 %v312
      %v423 = vunpack.c.l.b16 %v313
      %v424 = vunpack.c.l.b16 %v314
      %v425 = vunpack.c.l.b16 %v315
      %v426 = vunpack.c.l.b16 %v316
      %v427 = vpack.c.b16 %v412, %v411
      %v428 = vpack.c.b16 %v414, %v413
      %v429 = vpack.c.b16 %v416, %v415
      %v430 = vpack.c.b16 %v418, %v417
      %v431 = vpack.c.b16 %v420, %v419
      %v432 = vpack.c.b16 %v422, %v421
      %v433 = vpack.c.b16 %v424, %v423
      %v434 = vpack.c.b16 %v426, %v425
      %443 = vmatprep.subr.bf16.mxu0 0
      %444 = vmatpush1.bf16.msra.mxu0 %v434
      %445 = vmatprep.subr.bf16.mxu0 0
      %446 = vmatpush1.bf16.msra.mxu0 %v433
      %447 = vmatprep.subr.bf16.mxu0 0
      %448 = vmatpush1.bf16.msra.mxu0 %v432
      %449 = vmatprep.subr.bf16.mxu0 0
      %450 = vmatpush1.bf16.msra.mxu0 %v431
      %451 = vmatprep.subr.bf16.mxu0 0
      %452 = vmatpush1.bf16.msra.mxu0 %v430
      %453 = vmatprep.subr.bf16.mxu0 0
      %454 = vmatpush1.bf16.msra.mxu0 %v429
      %455 = vmatprep.subr.bf16.mxu0 0
      %456 = vmatpush1.bf16.msra.mxu0 %v428
      %457 = vmatprep.subr.bf16.mxu0 0
      %458 = vmatpush1.bf16.msra.mxu0 %v427
      %459 = vmatprep.subr.bf16.mxu0 0
      %460 = vmatpush2.bf16.msra.mxu0 0
      %461 = vmatprep.subr.bf16.mxu0 0
      %462 = vmatpush2.bf16.msra.mxu0 0
      %463 = vmatprep.subr.bf16.mxu0 0
      %464 = vmatpush2.bf16.msra.mxu0 0
      %465 = vmatprep.subr.bf16.mxu0 0
      %466 = vmatpush2.bf16.msra.mxu0 0
      %467 = vmatprep.subr.bf16.mxu0 0
      %468 = vmatpush2.bf16.msra.mxu0 0
      %469 = vmatprep.subr.bf16.mxu0 0
      %470 = vmatpush2.bf16.msra.mxu0 0
      %471 = vmatprep.subr.bf16.mxu0 0
      %472 = vmatpush2.bf16.msra.mxu0 0
      %473 = vmatprep.subr.bf16.mxu0 0
      %474 = vmatpush2.bf16.msra.mxu0 0
      %475 = vmatprep.mubr.bf16.mxu0 0
      %476 = vmatmul.mubr.bf16.gmra.mxu0 %v357
      %v477 = vpop.f32.mrf.mxu0
      %v478 = vadd.f32 0.0, %v477
      %v479 = vpop.f32.mrf.mxu0
      %v480 = vpop.f32.mrf.mxu0
      %v481 = vadd.f32 0.0, %v480
      %v482 = vpop.f32.mrf.mxu0
      %483 = vmatprep.mubr.bf16.mxu0 0
      %484 = vmatmul.mubr.bf16.gmra.mxu0 %v365
      %v485 = vpop.f32.mrf.mxu0
      %v486 = vadd.f32 0.0, %v485
      %v487 = vpop.f32.mrf.mxu0
      %v488 = vpop.f32.mrf.mxu0
      %v489 = vadd.f32 0.0, %v488
      %v490 = vpop.f32.mrf.mxu0
      %491 = vmatprep.mubr.bf16.mxu0 0
      %492 = vmatmul.mubr.bf16.gmra.mxu0 %v373
      %v493 = vpop.f32.mrf.mxu0
      %v494 = vadd.f32 0.0, %v493
      %v495 = vpop.f32.mrf.mxu0
      %v496 = vpop.f32.mrf.mxu0
      %v497 = vadd.f32 0.0, %v496
      %v498 = vpop.f32.mrf.mxu0
      %499 = vmatprep.mubr.bf16.mxu0 0
      %500 = vmatmul.mubr.bf16.gmra.mxu0 %v381
      %v501 = vpop.f32.mrf.mxu0
      %v502 = vadd.f32 0.0, %v501
      %v503 = vpop.f32.mrf.mxu0
      %v504 = vpop.f32.mrf.mxu0
      %v505 = vadd.f32 0.0, %v504
      %v506 = vpop.f32.mrf.mxu0
      %507 = vmatprep.mubr.bf16.mxu0 0
      %508 = vmatmul.mubr.bf16.gmra.mxu0 %v389
      %v509 = vpop.f32.mrf.mxu0
      %v510 = vadd.f32 0.0, %v509
      %v511 = vpop.f32.mrf.mxu0
      %v512 = vpop.f32.mrf.mxu0
      %v513 = vadd.f32 0.0, %v512
      %v514 = vpop.f32.mrf.mxu0
      %515 = vdwg.mxu0
      %v537 = vunpack.c.l.b16 %v283
      %v538 = vunpack.c.l.b16 %v284
      %v539 = vunpack.c.l.b16 %v285
      %v540 = vunpack.c.l.b16 %v286
      %v541 = vunpack.c.l.b16 %v287
      %v542 = vunpack.c.l.b16 %v288
      %v543 = vunpack.c.l.b16 %v289
      %v544 = vunpack.c.l.b16 %v290
      %v545 = vunpack.c.l.b16 %v291
      %v546 = vunpack.c.l.b16 %v292
      %v547 = vunpack.c.l.b16 %v293
      %v548 = vunpack.c.l.b16 %v294
      %v549 = vunpack.c.l.b16 %v295
      %v550 = vunpack.c.l.b16 %v296
      %v551 = vunpack.c.l.b16 %v297
      %v552 = vunpack.c.l.b16 %v298
      %v553 = vpack.c.b16 %v538, %v537
      %v554 = vpack.c.b16 %v540, %v539
      %v555 = vpack.c.b16 %v542, %v541
      %v556 = vpack.c.b16 %v544, %v543
      %v557 = vpack.c.b16 %v546, %v545
      %v558 = vpack.c.b16 %v548, %v547
      %v559 = vpack.c.b16 %v550, %v549
      %v560 = vpack.c.b16 %v552, %v551
      %569 = vmatprep.subr.bf16.mxu0 0
      %570 = vmatpush1.bf16.msra.mxu0 %v560
      %571 = vmatprep.subr.bf16.mxu0 0
      %572 = vmatpush1.bf16.msra.mxu0 %v559
      %573 = vmatprep.subr.bf16.mxu0 0
      %574 = vmatpush1.bf16.msra.mxu0 %v558
      %575 = vmatprep.subr.bf16.mxu0 0
      %576 = vmatpush1.bf16.msra.mxu0 %v557
      %577 = vmatprep.subr.bf16.mxu0 0
      %578 = vmatpush1.bf16.msra.mxu0 %v556
      %579 = vmatprep.subr.bf16.mxu0 0
      %580 = vmatpush1.bf16.msra.mxu0 %v555
      %581 = vmatprep.subr.bf16.mxu0 0
      %582 = vmatpush1.bf16.msra.mxu0 %v554
      %583 = vmatprep.subr.bf16.mxu0 0
      %584 = vmatpush1.bf16.msra.mxu0 %v553
      %585 = vmatprep.subr.bf16.mxu0 0
      %586 = vmatpush2.bf16.msra.mxu0 0
      %587 = vmatprep.subr.bf16.mxu0 0
      %588 = vmatpush2.bf16.msra.mxu0 0
      %589 = vmatprep.subr.bf16.mxu0 0
      %590 = vmatpush2.bf16.msra.mxu0 0
      %591 = vmatprep.subr.bf16.mxu0 0
      %592 = vmatpush2.bf16.msra.mxu0 0
      %593 = vmatprep.subr.bf16.mxu0 0
      %594 = vmatpush2.bf16.msra.mxu0 0
      %595 = vmatprep.subr.bf16.mxu0 0
      %596 = vmatpush2.bf16.msra.mxu0 0
      %597 = vmatprep.subr.bf16.mxu0 0
      %598 = vmatpush2.bf16.msra.mxu0 0
      %599 = vmatprep.subr.bf16.mxu0 0
      %600 = vmatpush2.bf16.msra.mxu0 0
      %601 = vmatprep.mubr.bf16.mxu0 0
      %602 = vmatmul.mubr.bf16.gmra.mxu0 %v339
      %v603 = vpop.f32.mrf.mxu0
      %v604 = vadd.f32 %v478, %v603
      %v605 = vpop.f32.mrf.mxu0
      %v606 = vpop.f32.mrf.mxu0
      %v607 = vadd.f32 %v481, %v606
      %v608 = vpop.f32.mrf.mxu0
      %609 = vmatprep.mubr.bf16.mxu0 0
      %610 = vmatmul.mubr.bf16.gmra.mxu0 %v340
      %v611 = vpop.f32.mrf.mxu0
      %v612 = vadd.f32 %v486, %v611
      %v613 = vpop.f32.mrf.mxu0
      %v614 = vpop.f32.mrf.mxu0
      %v615 = vadd.f32 %v489, %v614
      %v616 = vpop.f32.mrf.mxu0
      %617 = vmatprep.mubr.bf16.mxu0 0
      %618 = vmatmul.mubr.bf16.gmra.mxu0 %v341
      %v619 = vpop.f32.mrf.mxu0
      %v620 = vadd.f32 %v494, %v619
      %v621 = vpop.f32.mrf.mxu0
      %v622 = vpop.f32.mrf.mxu0
      %v623 = vadd.f32 %v497, %v622
      %v624 = vpop.f32.mrf.mxu0
      %625 = vmatprep.mubr.bf16.mxu0 0
      %626 = vmatmul.mubr.bf16.gmra.mxu0 %v342
      %v627 = vpop.f32.mrf.mxu0
      %v628 = vadd.f32 %v502, %v627
      %v629 = vpop.f32.mrf.mxu0
      %v630 = vpop.f32.mrf.mxu0
      %v631 = vadd.f32 %v505, %v630
      %v632 = vpop.f32.mrf.mxu0
      %633 = vmatprep.mubr.bf16.mxu0 0
      %634 = vmatmul.mubr.bf16.gmra.mxu0 %v343
      %v635 = vpop.f32.mrf.mxu0
      %v636 = vadd.f32 %v510, %v635
      %v637 = vpop.f32.mrf.mxu0
      %v638 = vpop.f32.mrf.mxu0
      %v639 = vadd.f32 %v513, %v638
      %v640 = vpop.f32.mrf.mxu0
      %641 = vdwg.mxu0
      %v642 = vld [vmem:[%s261] sm:$0xe]
      %s643 = scalar_lea.vmem %s1, 128
      %v644 = vld [vmem:[%s643] sm:$0xf]
      %v645 = vld [vmem:[%s643 + $0x4] sm:$0xf]
      %v646 = vld [vmem:[%s643 + $0x8] sm:$0xf]
      %v647 = vld [vmem:[%s643 + $0xc] sm:$0xf]
      %v648 = vld [vmem:[%s643 + $0x10] sm:$0xf]
      %v649 = vld [vmem:[%s643 + $0x14] sm:$0xf]
      %v650 = vld [vmem:[%s643 + $0x18] sm:$0xf]
      %v651 = vld [vmem:[%s643 + $0x1c] sm:$0xf]
      %v652 = vld [vmem:[%s643 + $0x20] sm:$0xf]
      %v653 = vld [vmem:[%s643 + $0x24] sm:$0xf]
      %v654 = vld [vmem:[%s643 + $0x28] sm:$0xf]
      %v655 = vld [vmem:[%s643 + $0x2c] sm:$0xf]
      %v656 = vld [vmem:[%s643 + $0x30] sm:$0xf]
      %v657 = vld [vmem:[%s643 + $0x34] sm:$0xf]
      %v658 = vld [vmem:[%s643 + $0x38] sm:$0xf]
      %v659 = vld [vmem:[%s643 + $0x3c] sm:$0xf]
      %v661 = vunpack.c.l.b16 %v642
      %v662 = vpack.c.b16 %v329, %v661
      %vm663 = vcmask 1046528
      %v664 = vrot.slane %v662, 1
      %v665 = vrot.slane %v340, 1
      %v666 = vsel %vm663, %v664, %v665
      %v667 = vrot.slane %v341, 1
      %v668 = vsel %vm663, %v665, %v667
      %v669 = vrot.slane %v342, 1
      %v670 = vsel %vm663, %v667, %v669
      %v671 = vrot.slane %v343, 1
      %v672 = vsel %vm663, %v669, %v671
      %v673 = vrot.slane %v344, 1
      %v674 = vsel %vm663, %v671, %v673
      %v696 = vunpack.c.l.b16 %v644
      %v697 = vunpack.c.l.b16 %v645
      %v698 = vunpack.c.l.b16 %v646
      %v699 = vunpack.c.l.b16 %v647
      %v700 = vunpack.c.l.b16 %v648
      %v701 = vunpack.c.l.b16 %v649
      %v702 = vunpack.c.l.b16 %v650
      %v703 = vunpack.c.l.b16 %v651
      %v704 = vunpack.c.l.b16 %v652
      %v705 = vunpack.c.l.b16 %v653
      %v706 = vunpack.c.l.b16 %v654
      %v707 = vunpack.c.l.b16 %v655
      %v708 = vunpack.c.l.b16 %v656
      %v709 = vunpack.c.l.b16 %v657
      %v710 = vunpack.c.l.b16 %v658
      %v711 = vunpack.c.l.b16 %v659
      %v712 = vpack.c.b16 %v697, %v696
      %v713 = vpack.c.b16 %v699, %v698
      %v714 = vpack.c.b16 %v701, %v700
      %v715 = vpack.c.b16 %v703, %v702
      %v716 = vpack.c.b16 %v705, %v704
      %v717 = vpack.c.b16 %v707, %v706
      %v718 = vpack.c.b16 %v709, %v708
      %v719 = vpack.c.b16 %v711, %v710
      %728 = vmatprep.subr.bf16.mxu0 0
      %729 = vmatpush1.bf16.msra.mxu0 %v719
      %730 = vmatprep.subr.bf16.mxu0 0
      %731 = vmatpush1.bf16.msra.mxu0 %v718
      %732 = vmatprep.subr.bf16.mxu0 0
      %733 = vmatpush1.bf16.msra.mxu0 %v717
      %734 = vmatprep.subr.bf16.mxu0 0
      %735 = vmatpush1.bf16.msra.mxu0 %v716
      %736 = vmatprep.subr.bf16.mxu0 0
      %737 = vmatpush1.bf16.msra.mxu0 %v715
      %738 = vmatprep.subr.bf16.mxu0 0
      %739 = vmatpush1.bf16.msra.mxu0 %v714
      %740 = vmatprep.subr.bf16.mxu0 0
      %741 = vmatpush1.bf16.msra.mxu0 %v713
      %742 = vmatprep.subr.bf16.mxu0 0
      %743 = vmatpush1.bf16.msra.mxu0 %v712
      %744 = vmatprep.subr.bf16.mxu0 0
      %745 = vmatpush2.bf16.msra.mxu0 0
      %746 = vmatprep.subr.bf16.mxu0 0
      %747 = vmatpush2.bf16.msra.mxu0 0
      %748 = vmatprep.subr.bf16.mxu0 0
      %749 = vmatpush2.bf16.msra.mxu0 0
      %750 = vmatprep.subr.bf16.mxu0 0
      %751 = vmatpush2.bf16.msra.mxu0 0
      %752 = vmatprep.subr.bf16.mxu0 0
      %753 = vmatpush2.bf16.msra.mxu0 0
      %754 = vmatprep.subr.bf16.mxu0 0
      %755 = vmatpush2.bf16.msra.mxu0 0
      %756 = vmatprep.subr.bf16.mxu0 0
      %757 = vmatpush2.bf16.msra.mxu0 0
      %758 = vmatprep.subr.bf16.mxu0 0
      %759 = vmatpush2.bf16.msra.mxu0 0
      %760 = vmatprep.mubr.bf16.mxu0 0
      %761 = vmatmul.mubr.bf16.gmra.mxu0 %v666
      %v762 = vpop.f32.mrf.mxu0
      %v763 = vadd.f32 0.0, %v762
      %v764 = vpop.f32.mrf.mxu0
      %v765 = vpop.f32.mrf.mxu0
      %v766 = vadd.f32 0.0, %v765
      %v767 = vpop.f32.mrf.mxu0
      %768 = vmatprep.mubr.bf16.mxu0 0
      %769 = vmatmul.mubr.bf16.gmra.mxu0 %v668
      %v770 = vpop.f32.mrf.mxu0
      %v771 = vadd.f32 0.0, %v770
      %v772 = vpop.f32.mrf.mxu0
      %v773 = vpop.f32.mrf.mxu0
      %v774 = vadd.f32 0.0, %v773
      %v775 = vpop.f32.mrf.mxu0
      %776 = vmatprep.mubr.bf16.mxu0 0
      %777 = vmatmul.mubr.bf16.gmra.mxu0 %v670
      %v778 = vpop.f32.mrf.mxu0
      %v779 = vadd.f32 0.0, %v778
      %v780 = vpop.f32.mrf.mxu0
      %v781 = vpop.f32.mrf.mxu0
      %v782 = vadd.f32 0.0, %v781
      %v783 = vpop.f32.mrf.mxu0
      %784 = vmatprep.mubr.bf16.mxu0 0
      %785 = vmatmul.mubr.bf16.gmra.mxu0 %v672
      %v786 = vpop.f32.mrf.mxu0
      %v787 = vadd.f32 0.0, %v786
      %v788 = vpop.f32.mrf.mxu0
      %v789 = vpop.f32.mrf.mxu0
      %v790 = vadd.f32 0.0, %v789
      %v791 = vpop.f32.mrf.mxu0
      %792 = vmatprep.mubr.bf16.mxu0 0
      %793 = vmatmul.mubr.bf16.gmra.mxu0 %v674
      %v794 = vpop.f32.mrf.mxu0
      %v795 = vadd.f32 0.0, %v794
      %v796 = vpop.f32.mrf.mxu0
      %v797 = vpop.f32.mrf.mxu0
      %v798 = vadd.f32 0.0, %v797
      %v799 = vpop.f32.mrf.mxu0
      %800 = vdwg.mxu0
      %v801 = vadd.f32 %v604, %v763
      %v802 = vadd.f32 %v607, %v766
      %v803 = vadd.f32 %v612, %v771
      %v804 = vadd.f32 %v615, %v774
      %v805 = vadd.f32 %v620, %v779
      %v806 = vadd.f32 %v623, %v782
      %v807 = vadd.f32 %v628, %v787
      %v808 = vadd.f32 %v631, %v790
      %v809 = vadd.f32 %v636, %v795
      %v810 = vadd.f32 %v639, %v798
      %v811 = vld [vmem:[%s261 + $0x4] sm:$0xe]
      %v812 = vld [vmem:[%s261 + $0x8] sm:$0xf]
      %v813 = vld [vmem:[%s261 + $0xc] sm:$0xf]
      %v814 = vld [vmem:[%s261 + $0x10] sm:$0xf]
      %v815 = vld [vmem:[%s261 + $0x14] sm:$0xf]
      %v816 = vld [vmem:[%s261 + $0x18] sm:$0xf]
      %v817 = vld [vmem:[%s261 + $0x1c] sm:$0xf]
      %v818 = vld [vmem:[%s261 + $0x20] sm:$0xf]
      %v819 = vld [vmem:[%s261 + $0x24] sm:$0xf]
      %v820 = vld [vmem:[%s261 + $0x28] sm:$0xf]
      %v821 = vld [vmem:[%s261 + $0x2c] sm:$0x1]
      %s822 = scalar_lea.vmem %s1, 192
      %v823 = vld [vmem:[%s822] sm:$0xf]
      %v824 = vld [vmem:[%s822 + $0x4] sm:$0xf]
      %v825 = vld [vmem:[%s822 + $0x8] sm:$0xf]
      %v826 = vld [vmem:[%s822 + $0xc] sm:$0xf]
      %v827 = vld [vmem:[%s822 + $0x10] sm:$0xf]
      %v828 = vld [vmem:[%s822 + $0x14] sm:$0xf]
      %v829 = vld [vmem:[%s822 + $0x18] sm:$0xf]
      %v830 = vld [vmem:[%s822 + $0x1c] sm:$0xf]
      %v831 = vld [vmem:[%s822 + $0x20] sm:$0xf]
      %v832 = vld [vmem:[%s822 + $0x24] sm:$0xf]
      %v833 = vld [vmem:[%s822 + $0x28] sm:$0xf]
      %v834 = vld [vmem:[%s822 + $0x2c] sm:$0xf]
      %v835 = vld [vmem:[%s822 + $0x30] sm:$0xf]
      %v836 = vld [vmem:[%s822 + $0x34] sm:$0xf]
      %v837 = vld [vmem:[%s822 + $0x38] sm:$0xf]
      %v838 = vld [vmem:[%s822 + $0x3c] sm:$0xf]
      %v850 = vunpack.c.l.b16 %v811
      %v851 = vunpack.c.l.b16 %v812
      %v852 = vunpack.c.l.b16 %v813
      %v853 = vunpack.c.l.b16 %v814
      %v854 = vunpack.c.l.b16 %v815
      %v855 = vunpack.c.l.b16 %v816
      %v856 = vunpack.c.l.b16 %v817
      %v857 = vunpack.c.l.b16 %v818
      %v858 = vunpack.c.l.b16 %v819
      %v859 = vunpack.c.l.b16 %v820
      %v860 = vunpack.c.l.b16 %v821
      %v861 = vpack.c.b16 %v851, %v850
      %v862 = vpack.c.b16 %v853, %v852
      %v863 = vpack.c.b16 %v855, %v854
      %v864 = vpack.c.b16 %v857, %v856
      %v865 = vpack.c.b16 %v859, %v858
      %v866 = vpack.c.b16 %v860, %v860
      %v867 = vrot.slane %v861, 1
      %v868 = vrot.slane %v862, 1
      %v869 = vsel %vm663, %v867, %v868
      %v870 = vrot.slane %v863, 1
      %v871 = vsel %vm663, %v868, %v870
      %v872 = vrot.slane %v864, 1
      %v873 = vsel %vm663, %v870, %v872
      %v874 = vrot.slane %v865, 1
      %v875 = vsel %vm663, %v872, %v874
      %v876 = vrot.slane %v866, 1
      %v877 = vsel %vm663, %v874, %v876
      %v899 = vunpack.c.l.b16 %v823
      %v900 = vunpack.c.l.b16 %v824
      %v901 = vunpack.c.l.b16 %v825
      %v902 = vunpack.c.l.b16 %v826
      %v903 = vunpack.c.l.b16 %v827
      %v904 = vunpack.c.l.b16 %v828
      %v905 = vunpack.c.l.b16 %v829
      %v906 = vunpack.c.l.b16 %v830
      %v907 = vunpack.c.l.b16 %v831
      %v908 = vunpack.c.l.b16 %v832
      %v909 = vunpack.c.l.b16 %v833
      %v910 = vunpack.c.l.b16 %v834
      %v911 = vunpack.c.l.b16 %v835
      %v912 = vunpack.c.l.b16 %v836
      %v913 = vunpack.c.l.b16 %v837
      %v914 = vunpack.c.l.b16 %v838
      %v915 = vpack.c.b16 %v900, %v899
      %v916 = vpack.c.b16 %v902, %v901
      %v917 = vpack.c.b16 %v904, %v903
      %v918 = vpack.c.b16 %v906, %v905
      %v919 = vpack.c.b16 %v908, %v907
      %v920 = vpack.c.b16 %v910, %v909
      %v921 = vpack.c.b16 %v912, %v911
      %v922 = vpack.c.b16 %v914, %v913
      %931 = vmatprep.subr.bf16.mxu0 0
      %932 = vmatpush1.bf16.msra.mxu0 %v922
      %933 = vmatprep.subr.bf16.mxu0 0
      %934 = vmatpush1.bf16.msra.mxu0 %v921
      %935 = vmatprep.subr.bf16.mxu0 0
      %936 = vmatpush1.bf16.msra.mxu0 %v920
      %937 = vmatprep.subr.bf16.mxu0 0
      %938 = vmatpush1.bf16.msra.mxu0 %v919
      %939 = vmatprep.subr.bf16.mxu0 0
      %940 = vmatpush1.bf16.msra.mxu0 %v918
      %941 = vmatprep.subr.bf16.mxu0 0
      %942 = vmatpush1.bf16.msra.mxu0 %v917
      %943 = vmatprep.subr.bf16.mxu0 0
      %944 = vmatpush1.bf16.msra.mxu0 %v916
      %945 = vmatprep.subr.bf16.mxu0 0
      %946 = vmatpush1.bf16.msra.mxu0 %v915
      %947 = vmatprep.subr.bf16.mxu0 0
      %948 = vmatpush2.bf16.msra.mxu0 0
      %949 = vmatprep.subr.bf16.mxu0 0
      %950 = vmatpush2.bf16.msra.mxu0 0
      %951 = vmatprep.subr.bf16.mxu0 0
      %952 = vmatpush2.bf16.msra.mxu0 0
      %953 = vmatprep.subr.bf16.mxu0 0
      %954 = vmatpush2.bf16.msra.mxu0 0
      %955 = vmatprep.subr.bf16.mxu0 0
      %956 = vmatpush2.bf16.msra.mxu0 0
      %957 = vmatprep.subr.bf16.mxu0 0
      %958 = vmatpush2.bf16.msra.mxu0 0
      %959 = vmatprep.subr.bf16.mxu0 0
      %960 = vmatpush2.bf16.msra.mxu0 0
      %961 = vmatprep.subr.bf16.mxu0 0
      %962 = vmatpush2.bf16.msra.mxu0 0
      %963 = vmatprep.mubr.bf16.mxu0 0
      %964 = vmatmul.mubr.bf16.gmra.mxu0 %v869
      %v965 = vpop.f32.mrf.mxu0
      %v966 = vadd.f32 0.0, %v965
      %v967 = vpop.f32.mrf.mxu0
      %v968 = vpop.f32.mrf.mxu0
      %v969 = vadd.f32 0.0, %v968
      %v970 = vpop.f32.mrf.mxu0
      %971 = vmatprep.mubr.bf16.mxu0 0
      %972 = vmatmul.mubr.bf16.gmra.mxu0 %v871
      %v973 = vpop.f32.mrf.mxu0
      %v974 = vadd.f32 0.0, %v973
      %v975 = vpop.f32.mrf.mxu0
      %v976 = vpop.f32.mrf.mxu0
      %v977 = vadd.f32 0.0, %v976
      %v978 = vpop.f32.mrf.mxu0
      %979 = vmatprep.mubr.bf16.mxu0 0
      %980 = vmatmul.mubr.bf16.gmra.mxu0 %v873
      %v981 = vpop.f32.mrf.mxu0
      %v982 = vadd.f32 0.0, %v981
      %v983 = vpop.f32.mrf.mxu0
      %v984 = vpop.f32.mrf.mxu0
      %v985 = vadd.f32 0.0, %v984
      %v986 = vpop.f32.mrf.mxu0
      %987 = vmatprep.mubr.bf16.mxu0 0
      %988 = vmatmul.mubr.bf16.gmra.mxu0 %v875
      %v989 = vpop.f32.mrf.mxu0
      %v990 = vadd.f32 0.0, %v989
      %v991 = vpop.f32.mrf.mxu0
      %v992 = vpop.f32.mrf.mxu0
      %v993 = vadd.f32 0.0, %v992
      %v994 = vpop.f32.mrf.mxu0
      %995 = vmatprep.mubr.bf16.mxu0 0
      %996 = vmatmul.mubr.bf16.gmra.mxu0 %v877
      %v997 = vpop.f32.mrf.mxu0
      %v998 = vadd.f32 0.0, %v997
      %v999 = vpop.f32.mrf.mxu0
      %v1000 = vpop.f32.mrf.mxu0
      %v1001 = vadd.f32 0.0, %v1000
      %v1002 = vpop.f32.mrf.mxu0
      %1003 = vdwg.mxu0
      %v1004 = vadd.f32 %v801, %v966
      %v1005 = vadd.f32 %v802, %v969
      %v1006 = vadd.f32 %v803, %v974
      %v1007 = vadd.f32 %v804, %v977
      %v1008 = vadd.f32 %v805, %v982
      %v1009 = vadd.f32 %v806, %v985
      %v1010 = vadd.f32 %v807, %v990
      %v1011 = vadd.f32 %v808, %v993
      %v1012 = vadd.f32 %v809, %v998
      %v1013 = vadd.f32 %v810, %v1001
      %v1014 = vld [vmem:[%s261 + $0x2c] sm:$0x3]
      %s1015 = scalar_lea.vmem %s1, 256
      %v1016 = vld [vmem:[%s1015] sm:$0xf]
      %v1017 = vld [vmem:[%s1015 + $0x4] sm:$0xf]
      %v1018 = vld [vmem:[%s1015 + $0x8] sm:$0xf]
      %v1019 = vld [vmem:[%s1015 + $0xc] sm:$0xf]
      %v1020 = vld [vmem:[%s1015 + $0x10] sm:$0xf]
      %v1021 = vld [vmem:[%s1015 + $0x14] sm:$0xf]
      %v1022 = vld [vmem:[%s1015 + $0x18] sm:$0xf]
      %v1023 = vld [vmem:[%s1015 + $0x1c] sm:$0xf]
      %v1024 = vld [vmem:[%s1015 + $0x20] sm:$0xf]
      %v1025 = vld [vmem:[%s1015 + $0x24] sm:$0xf]
      %v1026 = vld [vmem:[%s1015 + $0x28] sm:$0xf]
      %v1027 = vld [vmem:[%s1015 + $0x2c] sm:$0xf]
      %v1028 = vld [vmem:[%s1015 + $0x30] sm:$0xf]
      %v1029 = vld [vmem:[%s1015 + $0x34] sm:$0xf]
      %v1030 = vld [vmem:[%s1015 + $0x38] sm:$0xf]
      %v1031 = vld [vmem:[%s1015 + $0x3c] sm:$0xf]
      %v1033 = vunpack.c.l.b16 %v1014
      %v1034 = vpack.c.b16 %v1033, %v1033
      %vm1035 = vsmask.f32 6400
      %v1037 = vshrl.u32 %v861, 16
      %v1039 = vrot.slane %v1037, 1
      %v1040 = vshll.u32 %v861, 16
      %v1042 = vrot.slane %v1040, 2
      %v1043 = vor.u32 %v1039, %v1042
      %v1045 = vshrl.u32 %v862, 16
      %v1047 = vrot.slane %v1045, 1
      %v1048 = vshll.u32 %v862, 16
      %v1050 = vrot.slane %v1048, 2
      %v1051 = vor.u32 %v1047, %v1050
      %v1052 = vsel %vm1035, %v1043, %v1051
      %v1054 = vshrl.u32 %v863, 16
      %v1056 = vrot.slane %v1054, 1
      %v1057 = vshll.u32 %v863, 16
      %v1059 = vrot.slane %v1057, 2
      %v1060 = vor.u32 %v1056, %v1059
      %v1061 = vsel %vm1035, %v1051, %v1060
      %v1063 = vshrl.u32 %v864, 16
      %v1065 = vrot.slane %v1063, 1
      %v1066 = vshll.u32 %v864, 16
      %v1068 = vrot.slane %v1066, 2
      %v1069 = vor.u32 %v1065, %v1068
      %v1070 = vsel %vm1035, %v1060, %v1069
      %v1072 = vshrl.u32 %v865, 16
      %v1074 = vrot.slane %v1072, 1
      %v1075 = vshll.u32 %v865, 16
      %v1077 = vrot.slane %v1075, 2
      %v1078 = vor.u32 %v1074, %v1077
      %v1079 = vsel %vm1035, %v1069, %v1078
      %v1081 = vshrl.u32 %v1034, 16
      %v1083 = vrot.slane %v1081, 1
      %v1084 = vshll.u32 %v1034, 16
      %v1086 = vrot.slane %v1084, 2
      %v1087 = vor.u32 %v1083, %v1086
      %v1088 = vsel %vm1035, %v1078, %v1087
      %v1110 = vunpack.c.l.b16 %v1016
      %v1111 = vunpack.c.l.b16 %v1017
      %v1112 = vunpack.c.l.b16 %v1018
      %v1113 = vunpack.c.l.b16 %v1019
      %v1114 = vunpack.c.l.b16 %v1020
      %v1115 = vunpack.c.l.b16 %v1021
      %v1116 = vunpack.c.l.b16 %v1022
      %v1117 = vunpack.c.l.b16 %v1023
      %v1118 = vunpack.c.l.b16 %v1024
      %v1119 = vunpack.c.l.b16 %v1025
      %v1120 = vunpack.c.l.b16 %v1026
      %v1121 = vunpack.c.l.b16 %v1027
      %v1122 = vunpack.c.l.b16 %v1028
      %v1123 = vunpack.c.l.b16 %v1029
      %v1124 = vunpack.c.l.b16 %v1030
      %v1125 = vunpack.c.l.b16 %v1031
      %v1126 = vpack.c.b16 %v1111, %v1110
      %v1127 = vpack.c.b16 %v1113, %v1112
      %v1128 = vpack.c.b16 %v1115, %v1114
      %v1129 = vpack.c.b16 %v1117, %v1116
      %v1130 = vpack.c.b16 %v1119, %v1118
      %v1131 = vpack.c.b16 %v1121, %v1120
      %v1132 = vpack.c.b16 %v1123, %v1122
      %v1133 = vpack.c.b16 %v1125, %v1124
      %1142 = vmatprep.subr.bf16.mxu0 0
      %1143 = vmatpush1.bf16.msra.mxu0 %v1133
      %1144 = vmatprep.subr.bf16.mxu0 0
      %1145 = vmatpush1.bf16.msra.mxu0 %v1132
      %1146 = vmatprep.subr.bf16.mxu0 0
      %1147 = vmatpush1.bf16.msra.mxu0 %v1131
      %1148 = vmatprep.subr.bf16.mxu0 0
      %1149 = vmatpush1.bf16.msra.mxu0 %v1130
      %1150 = vmatprep.subr.bf16.mxu0 0
      %1151 = vmatpush1.bf16.msra.mxu0 %v1129
      %1152 = vmatprep.subr.bf16.mxu0 0
      %1153 = vmatpush1.bf16.msra.mxu0 %v1128
      %1154 = vmatprep.subr.bf16.mxu0 0
      %1155 = vmatpush1.bf16.msra.mxu0 %v1127
      %1156 = vmatprep.subr.bf16.mxu0 0
      %1157 = vmatpush1.bf16.msra.mxu0 %v1126
      %1158 = vmatprep.subr.bf16.mxu0 0
      %1159 = vmatpush2.bf16.msra.mxu0 0
      %1160 = vmatprep.subr.bf16.mxu0 0
      %1161 = vmatpush2.bf16.msra.mxu0 0
      %1162 = vmatprep.subr.bf16.mxu0 0
      %1163 = vmatpush2.bf16.msra.mxu0 0
      %1164 = vmatprep.subr.bf16.mxu0 0
      %1165 = vmatpush2.bf16.msra.mxu0 0
      %1166 = vmatprep.subr.bf16.mxu0 0
      %1167 = vmatpush2.bf16.msra.mxu0 0
      %1168 = vmatprep.subr.bf16.mxu0 0
      %1169 = vmatpush2.bf16.msra.mxu0 0
      %1170 = vmatprep.subr.bf16.mxu0 0
      %1171 = vmatpush2.bf16.msra.mxu0 0
      %1172 = vmatprep.subr.bf16.mxu0 0
      %1173 = vmatpush2.bf16.msra.mxu0 0
      %1174 = vmatprep.mubr.bf16.mxu0 0
      %1175 = vmatmul.mubr.bf16.gmra.mxu0 %v1052
      %v1176 = vpop.f32.mrf.mxu0
      %v1177 = vadd.f32 0.0, %v1176
      %v1178 = vpop.f32.mrf.mxu0
      %v1179 = vpop.f32.mrf.mxu0
      %v1180 = vadd.f32 0.0, %v1179
      %v1181 = vpop.f32.mrf.mxu0
      %1182 = vmatprep.mubr.bf16.mxu0 0
      %1183 = vmatmul.mubr.bf16.gmra.mxu0 %v1061
      %v1184 = vpop.f32.mrf.mxu0
      %v1185 = vadd.f32 0.0, %v1184
      %v1186 = vpop.f32.mrf.mxu0
      %v1187 = vpop.f32.mrf.mxu0
      %v1188 = vadd.f32 0.0, %v1187
      %v1189 = vpop.f32.mrf.mxu0
      %1190 = vmatprep.mubr.bf16.mxu0 0
      %1191 = vmatmul.mubr.bf16.gmra.mxu0 %v1070
      %v1192 = vpop.f32.mrf.mxu0
      %v1193 = vadd.f32 0.0, %v1192
      %v1194 = vpop.f32.mrf.mxu0
      %v1195 = vpop.f32.mrf.mxu0
      %v1196 = vadd.f32 0.0, %v1195
      %v1197 = vpop.f32.mrf.mxu0
      %1198 = vmatprep.mubr.bf16.mxu0 0
      %1199 = vmatmul.mubr.bf16.gmra.mxu0 %v1079
      %v1200 = vpop.f32.mrf.mxu0
      %v1201 = vadd.f32 0.0, %v1200
      %v1202 = vpop.f32.mrf.mxu0
      %v1203 = vpop.f32.mrf.mxu0
      %v1204 = vadd.f32 0.0, %v1203
      %v1205 = vpop.f32.mrf.mxu0
      %1206 = vmatprep.mubr.bf16.mxu0 0
      %1207 = vmatmul.mubr.bf16.gmra.mxu0 %v1088
      %v1208 = vpop.f32.mrf.mxu0
      %v1209 = vadd.f32 0.0, %v1208
      %v1210 = vpop.f32.mrf.mxu0
      %v1211 = vpop.f32.mrf.mxu0
      %v1212 = vadd.f32 0.0, %v1211
      %v1213 = vpop.f32.mrf.mxu0
      %1214 = vdwg.mxu0
      %v1215 = vadd.f32 %v1004, %v1177
      %v1216 = vadd.f32 %v1005, %v1180
      %v1217 = vadd.f32 %v1006, %v1185
      %v1218 = vadd.f32 %v1007, %v1188
      %v1219 = vadd.f32 %v1008, %v1193
      %v1220 = vadd.f32 %v1009, %v1196
      %v1221 = vadd.f32 %v1010, %v1201
      %v1222 = vadd.f32 %v1011, %v1204
      %v1223 = vadd.f32 %v1012, %v1209
      %v1224 = vadd.f32 %v1013, %v1212
      %v1225 = vld [vmem:[%s261 + $0x4] sm:$0xc]
      %s1226 = scalar_lea.vmem %s1, 320
      %v1227 = vld [vmem:[%s1226] sm:$0xf]
      %v1228 = vld [vmem:[%s1226 + $0x4] sm:$0xf]
      %v1229 = vld [vmem:[%s1226 + $0x8] sm:$0xf]
      %v1230 = vld [vmem:[%s1226 + $0xc] sm:$0xf]
      %v1231 = vld [vmem:[%s1226 + $0x10] sm:$0xf]
      %v1232 = vld [vmem:[%s1226 + $0x14] sm:$0xf]
      %v1233 = vld [vmem:[%s1226 + $0x18] sm:$0xf]
      %v1234 = vld [vmem:[%s1226 + $0x1c] sm:$0xf]
      %v1235 = vld [vmem:[%s1226 + $0x20] sm:$0xf]
      %v1236 = vld [vmem:[%s1226 + $0x24] sm:$0xf]
      %v1237 = vld [vmem:[%s1226 + $0x28] sm:$0xf]
      %v1238 = vld [vmem:[%s1226 + $0x2c] sm:$0xf]
      %v1239 = vld [vmem:[%s1226 + $0x30] sm:$0xf]
      %v1240 = vld [vmem:[%s1226 + $0x34] sm:$0xf]
      %v1241 = vld [vmem:[%s1226 + $0x38] sm:$0xf]
      %v1242 = vld [vmem:[%s1226 + $0x3c] sm:$0xf]
      %v1244 = vunpack.c.l.b16 %v1225
      %v1245 = vpack.c.b16 %v851, %v1244
      %vm1246 = vcmask 1045504
      %v1247 = vrot.slane %v1245, 2
      %v1248 = vrot.slane %v862, 2
      %v1249 = vsel %vm1246, %v1247, %v1248
      %v1250 = vrot.slane %v863, 2
      %v1251 = vsel %vm1246, %v1248, %v1250
      %v1252 = vrot.slane %v864, 2
      %v1253 = vsel %vm1246, %v1250, %v1252
      %v1254 = vrot.slane %v865, 2
      %v1255 = vsel %vm1246, %v1252, %v1254
      %v1256 = vrot.slane %v1034, 2
      %v1257 = vsel %vm1246, %v1254, %v1256
      %v1279 = vunpack.c.l.b16 %v1227
      %v1280 = vunpack.c.l.b16 %v1228
      %v1281 = vunpack.c.l.b16 %v1229
      %v1282 = vunpack.c.l.b16 %v1230
      %v1283 = vunpack.c.l.b16 %v1231
      %v1284 = vunpack.c.l.b16 %v1232
      %v1285 = vunpack.c.l.b16 %v1233
      %v1286 = vunpack.c.l.b16 %v1234
      %v1287 = vunpack.c.l.b16 %v1235
      %v1288 = vunpack.c.l.b16 %v1236
      %v1289 = vunpack.c.l.b16 %v1237
      %v1290 = vunpack.c.l.b16 %v1238
      %v1291 = vunpack.c.l.b16 %v1239
      %v1292 = vunpack.c.l.b16 %v1240
      %v1293 = vunpack.c.l.b16 %v1241
      %v1294 = vunpack.c.l.b16 %v1242
      %v1295 = vpack.c.b16 %v1280, %v1279
      %v1296 = vpack.c.b16 %v1282, %v1281
      %v1297 = vpack.c.b16 %v1284, %v1283
      %v1298 = vpack.c.b16 %v1286, %v1285
      %v1299 = vpack.c.b16 %v1288, %v1287
      %v1300 = vpack.c.b16 %v1290, %v1289
      %v1301 = vpack.c.b16 %v1292, %v1291
      %v1302 = vpack.c.b16 %v1294, %v1293
      %1311 = vmatprep.subr.bf16.mxu0 0
      %1312 = vmatpush1.bf16.msra.mxu0 %v1302
      %1313 = vmatprep.subr.bf16.mxu0 0
      %1314 = vmatpush1.bf16.msra.mxu0 %v1301
      %1315 = vmatprep.subr.bf16.mxu0 0
      %1316 = vmatpush1.bf16.msra.mxu0 %v1300
      %1317 = vmatprep.subr.bf16.mxu0 0
      %1318 = vmatpush1.bf16.msra.mxu0 %v1299
      %1319 = vmatprep.subr.bf16.mxu0 0
      %1320 = vmatpush1.bf16.msra.mxu0 %v1298
      %1321 = vmatprep.subr.bf16.mxu0 0
      %1322 = vmatpush1.bf16.msra.mxu0 %v1297
      %1323 = vmatprep.subr.bf16.mxu0 0
      %1324 = vmatpush1.bf16.msra.mxu0 %v1296
      %1325 = vmatprep.subr.bf16.mxu0 0
      %1326 = vmatpush1.bf16.msra.mxu0 %v1295
      %1327 = vmatprep.subr.bf16.mxu0 0
      %1328 = vmatpush2.bf16.msra.mxu0 0
      %1329 = vmatprep.subr.bf16.mxu0 0
      %1330 = vmatpush2.bf16.msra.mxu0 0
      %1331 = vmatprep.subr.bf16.mxu0 0
      %1332 = vmatpush2.bf16.msra.mxu0 0
      %1333 = vmatprep.subr.bf16.mxu0 0
      %1334 = vmatpush2.bf16.msra.mxu0 0
      %1335 = vmatprep.subr.bf16.mxu0 0
      %1336 = vmatpush2.bf16.msra.mxu0 0
      %1337 = vmatprep.subr.bf16.mxu0 0
      %1338 = vmatpush2.bf16.msra.mxu0 0
      %1339 = vmatprep.subr.bf16.mxu0 0
      %1340 = vmatpush2.bf16.msra.mxu0 0
      %1341 = vmatprep.subr.bf16.mxu0 0
      %1342 = vmatpush2.bf16.msra.mxu0 0
      %1343 = vmatprep.mubr.bf16.mxu0 0
      %1344 = vmatmul.mubr.bf16.gmra.mxu0 %v1249
      %v1345 = vpop.f32.mrf.mxu0
      %v1346 = vadd.f32 0.0, %v1345
      %v1347 = vpop.f32.mrf.mxu0
      %v1348 = vpop.f32.mrf.mxu0
      %v1349 = vadd.f32 0.0, %v1348
      %v1350 = vpop.f32.mrf.mxu0
      %1351 = vmatprep.mubr.bf16.mxu0 0
      %1352 = vmatmul.mubr.bf16.gmra.mxu0 %v1251
      %v1353 = vpop.f32.mrf.mxu0
      %v1354 = vadd.f32 0.0, %v1353
      %v1355 = vpop.f32.mrf.mxu0
      %v1356 = vpop.f32.mrf.mxu0
      %v1357 = vadd.f32 0.0, %v1356
      %v1358 = vpop.f32.mrf.mxu0
      %1359 = vmatprep.mubr.bf16.mxu0 0
      %1360 = vmatmul.mubr.bf16.gmra.mxu0 %v1253
      %v1361 = vpop.f32.mrf.mxu0
      %v1362 = vadd.f32 0.0, %v1361
      %v1363 = vpop.f32.mrf.mxu0
      %v1364 = vpop.f32.mrf.mxu0
      %v1365 = vadd.f32 0.0, %v1364
      %v1366 = vpop.f32.mrf.mxu0
      %1367 = vmatprep.mubr.bf16.mxu0 0
      %1368 = vmatmul.mubr.bf16.gmra.mxu0 %v1255
      %v1369 = vpop.f32.mrf.mxu0
      %v1370 = vadd.f32 0.0, %v1369
      %v1371 = vpop.f32.mrf.mxu0
      %v1372 = vpop.f32.mrf.mxu0
      %v1373 = vadd.f32 0.0, %v1372
      %v1374 = vpop.f32.mrf.mxu0
      %1375 = vmatprep.mubr.bf16.mxu0 0
      %1376 = vmatmul.mubr.bf16.gmra.mxu0 %v1257
      %v1377 = vpop.f32.mrf.mxu0
      %v1378 = vadd.f32 0.0, %v1377
      %v1379 = vpop.f32.mrf.mxu0
      %v1380 = vpop.f32.mrf.mxu0
      %v1381 = vadd.f32 0.0, %v1380
      %v1382 = vpop.f32.mrf.mxu0
      %1383 = vdwg.mxu0
      %v1384 = vadd.f32 %v1215, %v1346
      %v1385 = vadd.f32 %v1216, %v1349
      %v1386 = vadd.f32 %v1217, %v1354
      %v1387 = vadd.f32 %v1218, %v1357
      %v1388 = vadd.f32 %v1219, %v1362
      %v1389 = vadd.f32 %v1220, %v1365
      %v1390 = vadd.f32 %v1221, %v1370
      %v1391 = vadd.f32 %v1222, %v1373
      %v1392 = vadd.f32 %v1223, %v1378
      %v1393 = vadd.f32 %v1224, %v1381
      %v1394 = vld [vmem:[%s261 + $0x8] sm:$0xc]
      %v1395 = vld [vmem:[%s261 + $0xc] sm:$0xf]
      %v1396 = vld [vmem:[%s261 + $0x10] sm:$0xf]
      %v1397 = vld [vmem:[%s261 + $0x14] sm:$0xf]
      %v1398 = vld [vmem:[%s261 + $0x18] sm:$0xf]
      %v1399 = vld [vmem:[%s261 + $0x1c] sm:$0xf]
      %v1400 = vld [vmem:[%s261 + $0x20] sm:$0xf]
      %v1401 = vld [vmem:[%s261 + $0x24] sm:$0xf]
      %v1402 = vld [vmem:[%s261 + $0x28] sm:$0xf]
      %v1403 = vld [vmem:[%s261 + $0x2c] sm:$0xf]
      %v1404 = vld [vmem:[%s261 + $0x30] sm:$0x3]
      %s1405 = scalar_lea.vmem %s1, 384
      %v1406 = vld [vmem:[%s1405] sm:$0xf]
      %v1407 = vld [vmem:[%s1405 + $0x4] sm:$0xf]
      %v1408 = vld [vmem:[%s1405 + $0x8] sm:$0xf]
      %v1409 = vld [vmem:[%s1405 + $0xc] sm:$0xf]
      %v1410 = vld [vmem:[%s1405 + $0x10] sm:$0xf]
      %v1411 = vld [vmem:[%s1405 + $0x14] sm:$0xf]
      %v1412 = vld [vmem:[%s1405 + $0x18] sm:$0xf]
      %v1413 = vld [vmem:[%s1405 + $0x1c] sm:$0xf]
      %v1414 = vld [vmem:[%s1405 + $0x20] sm:$0xf]
      %v1415 = vld [vmem:[%s1405 + $0x24] sm:$0xf]
      %v1416 = vld [vmem:[%s1405 + $0x28] sm:$0xf]
      %v1417 = vld [vmem:[%s1405 + $0x2c] sm:$0xf]
      %v1418 = vld [vmem:[%s1405 + $0x30] sm:$0xf]
      %v1419 = vld [vmem:[%s1405 + $0x34] sm:$0xf]
      %v1420 = vld [vmem:[%s1405 + $0x38] sm:$0xf]
      %v1421 = vld [vmem:[%s1405 + $0x3c] sm:$0xf]
      %v1433 = vunpack.c.l.b16 %v1394
      %v1434 = vunpack.c.l.b16 %v1395
      %v1435 = vunpack.c.l.b16 %v1396
      %v1436 = vunpack.c.l.b16 %v1397
      %v1437 = vunpack.c.l.b16 %v1398
      %v1438 = vunpack.c.l.b16 %v1399
      %v1439 = vunpack.c.l.b16 %v1400
      %v1440 = vunpack.c.l.b16 %v1401
      %v1441 = vunpack.c.l.b16 %v1402
      %v1442 = vunpack.c.l.b16 %v1403
      %v1443 = vunpack.c.l.b16 %v1404
      %v1444 = vpack.c.b16 %v1434, %v1433
      %v1445 = vpack.c.b16 %v1436, %v1435
      %v1446 = vpack.c.b16 %v1438, %v1437
      %v1447 = vpack.c.b16 %v1440, %v1439
      %v1448 = vpack.c.b16 %v1442, %v1441
      %v1449 = vpack.c.b16 %v1443, %v1443
      %v1450 = vrot.slane %v1444, 2
      %v1451 = vrot.slane %v1445, 2
      %v1452 = vsel %vm1246, %v1450, %v1451
      %v1453 = vrot.slane %v1446, 2
      %v1454 = vsel %vm1246, %v1451, %v1453
      %v1455 = vrot.slane %v1447, 2
      %v1456 = vsel %vm1246, %v1453, %v1455
      %v1457 = vrot.slane %v1448, 2
      %v1458 = vsel %vm1246, %v1455, %v1457
      %v1459 = vrot.slane %v1449, 2
      %v1460 = vsel %vm1246, %v1457, %v1459
      %v1482 = vunpack.c.l.b16 %v1406
      %v1483 = vunpack.c.l.b16 %v1407
      %v1484 = vunpack.c.l.b16 %v1408
      %v1485 = vunpack.c.l.b16 %v1409
      %v1486 = vunpack.c.l.b16 %v1410
      %v1487 = vunpack.c.l.b16 %v1411
      %v1488 = vunpack.c.l.b16 %v1412
      %v1489 = vunpack.c.l.b16 %v1413
      %v1490 = vunpack.c.l.b16 %v1414
      %v1491 = vunpack.c.l.b16 %v1415
      %v1492 = vunpack.c.l.b16 %v1416
      %v1493 = vunpack.c.l.b16 %v1417
      %v1494 = vunpack.c.l.b16 %v1418
      %v1495 = vunpack.c.l.b16 %v1419
      %v1496 = vunpack.c.l.b16 %v1420
      %v1497 = vunpack.c.l.b16 %v1421
      %v1498 = vpack.c.b16 %v1483, %v1482
      %v1499 = vpack.c.b16 %v1485, %v1484
      %v1500 = vpack.c.b16 %v1487, %v1486
      %v1501 = vpack.c.b16 %v1489, %v1488
      %v1502 = vpack.c.b16 %v1491, %v1490
      %v1503 = vpack.c.b16 %v1493, %v1492
      %v1504 = vpack.c.b16 %v1495, %v1494
      %v1505 = vpack.c.b16 %v1497, %v1496
      %1514 = vmatprep.subr.bf16.mxu0 0
      %1515 = vmatpush1.bf16.msra.mxu0 %v1505
      %1516 = vmatprep.subr.bf16.mxu0 0
      %1517 = vmatpush1.bf16.msra.mxu0 %v1504
      %1518 = vmatprep.subr.bf16.mxu0 0
      %1519 = vmatpush1.bf16.msra.mxu0 %v1503
      %1520 = vmatprep.subr.bf16.mxu0 0
      %1521 = vmatpush1.bf16.msra.mxu0 %v1502
      %1522 = vmatprep.subr.bf16.mxu0 0
      %1523 = vmatpush1.bf16.msra.mxu0 %v1501
      %1524 = vmatprep.subr.bf16.mxu0 0
      %1525 = vmatpush1.bf16.msra.mxu0 %v1500
      %1526 = vmatprep.subr.bf16.mxu0 0
      %1527 = vmatpush1.bf16.msra.mxu0 %v1499
      %1528 = vmatprep.subr.bf16.mxu0 0
      %1529 = vmatpush1.bf16.msra.mxu0 %v1498
      %1530 = vmatprep.subr.bf16.mxu0 0
      %1531 = vmatpush2.bf16.msra.mxu0 0
      %1532 = vmatprep.subr.bf16.mxu0 0
      %1533 = vmatpush2.bf16.msra.mxu0 0
      %1534 = vmatprep.subr.bf16.mxu0 0
      %1535 = vmatpush2.bf16.msra.mxu0 0
      %1536 = vmatprep.subr.bf16.mxu0 0
      %1537 = vmatpush2.bf16.msra.mxu0 0
      %1538 = vmatprep.subr.bf16.mxu0 0
      %1539 = vmatpush2.bf16.msra.mxu0 0
      %1540 = vmatprep.subr.bf16.mxu0 0
      %1541 = vmatpush2.bf16.msra.mxu0 0
      %1542 = vmatprep.subr.bf16.mxu0 0
      %1543 = vmatpush2.bf16.msra.mxu0 0
      %1544 = vmatprep.subr.bf16.mxu0 0
      %1545 = vmatpush2.bf16.msra.mxu0 0
      %1546 = vmatprep.mubr.bf16.mxu0 0
      %1547 = vmatmul.mubr.bf16.gmra.mxu0 %v1452
      %v1548 = vpop.f32.mrf.mxu0
      %v1549 = vadd.f32 0.0, %v1548
      %v1550 = vpop.f32.mrf.mxu0
      %v1551 = vpop.f32.mrf.mxu0
      %v1552 = vadd.f32 0.0, %v1551
      %v1553 = vpop.f32.mrf.mxu0
      %1554 = vmatprep.mubr.bf16.mxu0 0
      %1555 = vmatmul.mubr.bf16.gmra.mxu0 %v1454
      %v1556 = vpop.f32.mrf.mxu0
      %v1557 = vadd.f32 0.0, %v1556
      %v1558 = vpop.f32.mrf.mxu0
      %v1559 = vpop.f32.mrf.mxu0
      %v1560 = vadd.f32 0.0, %v1559
      %v1561 = vpop.f32.mrf.mxu0
      %1562 = vmatprep.mubr.bf16.mxu0 0
      %1563 = vmatmul.mubr.bf16.gmra.mxu0 %v1456
      %v1564 = vpop.f32.mrf.mxu0
      %v1565 = vadd.f32 0.0, %v1564
      %v1566 = vpop.f32.mrf.mxu0
      %v1567 = vpop.f32.mrf.mxu0
      %v1568 = vadd.f32 0.0, %v1567
      %v1569 = vpop.f32.mrf.mxu0
      %1570 = vmatprep.mubr.bf16.mxu0 0
      %1571 = vmatmul.mubr.bf16.gmra.mxu0 %v1458
      %v1572 = vpop.f32.mrf.mxu0
      %v1573 = vadd.f32 0.0, %v1572
      %v1574 = vpop.f32.mrf.mxu0
      %v1575 = vpop.f32.mrf.mxu0
      %v1576 = vadd.f32 0.0, %v1575
      %v1577 = vpop.f32.mrf.mxu0
      %1578 = vmatprep.mubr.bf16.mxu0 0
      %1579 = vmatmul.mubr.bf16.gmra.mxu0 %v1460
      %v1580 = vpop.f32.mrf.mxu0
      %v1581 = vadd.f32 0.0, %v1580
      %v1582 = vpop.f32.mrf.mxu0
      %v1583 = vpop.f32.mrf.mxu0
      %v1584 = vadd.f32 0.0, %v1583
      %v1585 = vpop.f32.mrf.mxu0
      %1586 = vdwg.mxu0
      %v1587 = vadd.f32 %v1384, %v1549
      %v1588 = vadd.f32 %v1385, %v1552
      %v1589 = vadd.f32 %v1386, %v1557
      %v1590 = vadd.f32 %v1387, %v1560
      %v1591 = vadd.f32 %v1388, %v1565
      %v1592 = vadd.f32 %v1389, %v1568
      %v1593 = vadd.f32 %v1390, %v1573
      %v1594 = vadd.f32 %v1391, %v1576
      %v1595 = vadd.f32 %v1392, %v1581
      %v1596 = vadd.f32 %v1393, %v1584
      %v1597 = vld [vmem:[%s261 + $0x30] sm:$0x7]
      %s1598 = scalar_lea.vmem %s1, 448
      %v1599 = vld [vmem:[%s1598] sm:$0xf]
      %v1600 = vld [vmem:[%s1598 + $0x4] sm:$0xf]
      %v1601 = vld [vmem:[%s1598 + $0x8] sm:$0xf]
      %v1602 = vld [vmem:[%s1598 + $0xc] sm:$0xf]
      %v1603 = vld [vmem:[%s1598 + $0x10] sm:$0xf]
      %v1604 = vld [vmem:[%s1598 + $0x14] sm:$0xf]
      %v1605 = vld [vmem:[%s1598 + $0x18] sm:$0xf]
      %v1606 = vld [vmem:[%s1598 + $0x1c] sm:$0xf]
      %v1607 = vld [vmem:[%s1598 + $0x20] sm:$0xf]
      %v1608 = vld [vmem:[%s1598 + $0x24] sm:$0xf]
      %v1609 = vld [vmem:[%s1598 + $0x28] sm:$0xf]
      %v1610 = vld [vmem:[%s1598 + $0x2c] sm:$0xf]
      %v1611 = vld [vmem:[%s1598 + $0x30] sm:$0xf]
      %v1612 = vld [vmem:[%s1598 + $0x34] sm:$0xf]
      %v1613 = vld [vmem:[%s1598 + $0x38] sm:$0xf]
      %v1614 = vld [vmem:[%s1598 + $0x3c] sm:$0xf]
      %v1616 = vunpack.c.l.b16 %v1597
      %v1617 = vpack.c.b16 %v1616, %v1616
      %vm1618 = vsmask.f32 5376
      %v1620 = vshrl.u32 %v1444, 16
      %v1622 = vrot.slane %v1620, 2
      %v1623 = vshll.u32 %v1444, 16
      %v1625 = vrot.slane %v1623, 3
      %v1626 = vor.u32 %v1622, %v1625
      %v1628 = vshrl.u32 %v1445, 16
      %v1630 = vrot.slane %v1628, 2
      %v1631 = vshll.u32 %v1445, 16
      %v1633 = vrot.slane %v1631, 3
      %v1634 = vor.u32 %v1630, %v1633
      %v1635 = vsel %vm1618, %v1626, %v1634
      %v1637 = vshrl.u32 %v1446, 16
      %v1639 = vrot.slane %v1637, 2
      %v1640 = vshll.u32 %v1446, 16
      %v1642 = vrot.slane %v1640, 3
      %v1643 = vor.u32 %v1639, %v1642
      %v1644 = vsel %vm1618, %v1634, %v1643
      %v1646 = vshrl.u32 %v1447, 16
      %v1648 = vrot.slane %v1646, 2
      %v1649 = vshll.u32 %v1447, 16
      %v1651 = vrot.slane %v1649, 3
      %v1652 = vor.u32 %v1648, %v1651
      %v1653 = vsel %vm1618, %v1643, %v1652
      %v1655 = vshrl.u32 %v1448, 16
      %v1657 = vrot.slane %v1655, 2
      %v1658 = vshll.u32 %v1448, 16
      %v1660 = vrot.slane %v1658, 3
      %v1661 = vor.u32 %v1657, %v1660
      %v1662 = vsel %vm1618, %v1652, %v1661
      %v1664 = vshrl.u32 %v1617, 16
      %v1666 = vrot.slane %v1664, 2
      %v1667 = vshll.u32 %v1617, 16
      %v1669 = vrot.slane %v1667, 3
      %v1670 = vor.u32 %v1666, %v1669
      %v1671 = vsel %vm1618, %v1661, %v1670
      %v1693 = vunpack.c.l.b16 %v1599
      %v1694 = vunpack.c.l.b16 %v1600
      %v1695 = vunpack.c.l.b16 %v1601
      %v1696 = vunpack.c.l.b16 %v1602
      %v1697 = vunpack.c.l.b16 %v1603
      %v1698 = vunpack.c.l.b16 %v1604
      %v1699 = vunpack.c.l.b16 %v1605
      %v1700 = vunpack.c.l.b16 %v1606
      %v1701 = vunpack.c.l.b16 %v1607
      %v1702 = vunpack.c.l.b16 %v1608
      %v1703 = vunpack.c.l.b16 %v1609
      %v1704 = vunpack.c.l.b16 %v1610
      %v1705 = vunpack.c.l.b16 %v1611
      %v1706 = vunpack.c.l.b16 %v1612
      %v1707 = vunpack.c.l.b16 %v1613
      %v1708 = vunpack.c.l.b16 %v1614
      %v1709 = vpack.c.b16 %v1694, %v1693
      %v1710 = vpack.c.b16 %v1696, %v1695
      %v1711 = vpack.c.b16 %v1698, %v1697
      %v1712 = vpack.c.b16 %v1700, %v1699
      %v1713 = vpack.c.b16 %v1702, %v1701
      %v1714 = vpack.c.b16 %v1704, %v1703
      %v1715 = vpack.c.b16 %v1706, %v1705
      %v1716 = vpack.c.b16 %v1708, %v1707
      %1725 = vmatprep.subr.bf16.mxu0 0
      %1726 = vmatpush1.bf16.msra.mxu0 %v1716
      %1727 = vmatprep.subr.bf16.mxu0 0
      %1728 = vmatpush1.bf16.msra.mxu0 %v1715
      %1729 = vmatprep.subr.bf16.mxu0 0
      %1730 = vmatpush1.bf16.msra.mxu0 %v1714
      %1731 = vmatprep.subr.bf16.mxu0 0
      %1732 = vmatpush1.bf16.msra.mxu0 %v1713
      %1733 = vmatprep.subr.bf16.mxu0 0
      %1734 = vmatpush1.bf16.msra.mxu0 %v1712
      %1735 = vmatprep.subr.bf16.mxu0 0
      %1736 = vmatpush1.bf16.msra.mxu0 %v1711
      %1737 = vmatprep.subr.bf16.mxu0 0
      %1738 = vmatpush1.bf16.msra.mxu0 %v1710
      %1739 = vmatprep.subr.bf16.mxu0 0
      %1740 = vmatpush1.bf16.msra.mxu0 %v1709
      %1741 = vmatprep.subr.bf16.mxu0 0
      %1742 = vmatpush2.bf16.msra.mxu0 0
      %1743 = vmatprep.subr.bf16.mxu0 0
      %1744 = vmatpush2.bf16.msra.mxu0 0
      %1745 = vmatprep.subr.bf16.mxu0 0
      %1746 = vmatpush2.bf16.msra.mxu0 0
      %1747 = vmatprep.subr.bf16.mxu0 0
      %1748 = vmatpush2.bf16.msra.mxu0 0
      %1749 = vmatprep.subr.bf16.mxu0 0
      %1750 = vmatpush2.bf16.msra.mxu0 0
      %1751 = vmatprep.subr.bf16.mxu0 0
      %1752 = vmatpush2.bf16.msra.mxu0 0
      %1753 = vmatprep.subr.bf16.mxu0 0
      %1754 = vmatpush2.bf16.msra.mxu0 0
      %1755 = vmatprep.subr.bf16.mxu0 0
      %1756 = vmatpush2.bf16.msra.mxu0 0
      %1757 = vmatprep.mubr.bf16.mxu0 0
      %1758 = vmatmul.mubr.bf16.gmra.mxu0 %v1635
      %v1759 = vpop.f32.mrf.mxu0
      %v1760 = vadd.f32 0.0, %v1759
      %v1761 = vpop.f32.mrf.mxu0
      %v1762 = vpop.f32.mrf.mxu0
      %v1763 = vadd.f32 0.0, %v1762
      %v1764 = vpop.f32.mrf.mxu0
      %1765 = vmatprep.mubr.bf16.mxu0 0
      %1766 = vmatmul.mubr.bf16.gmra.mxu0 %v1644
      %v1767 = vpop.f32.mrf.mxu0
      %v1768 = vadd.f32 0.0, %v1767
      %v1769 = vpop.f32.mrf.mxu0
      %v1770 = vpop.f32.mrf.mxu0
      %v1771 = vadd.f32 0.0, %v1770
      %v1772 = vpop.f32.mrf.mxu0
      %1773 = vmatprep.mubr.bf16.mxu0 0
      %1774 = vmatmul.mubr.bf16.gmra.mxu0 %v1653
      %v1775 = vpop.f32.mrf.mxu0
      %v1776 = vadd.f32 0.0, %v1775
      %v1777 = vpop.f32.mrf.mxu0
      %v1778 = vpop.f32.mrf.mxu0
      %v1779 = vadd.f32 0.0, %v1778
      %v1780 = vpop.f32.mrf.mxu0
      %1781 = vmatprep.mubr.bf16.mxu0 0
      %1782 = vmatmul.mubr.bf16.gmra.mxu0 %v1662
      %v1783 = vpop.f32.mrf.mxu0
      %v1784 = vadd.f32 0.0, %v1783
      %v1785 = vpop.f32.mrf.mxu0
      %v1786 = vpop.f32.mrf.mxu0
      %v1787 = vadd.f32 0.0, %v1786
      %v1788 = vpop.f32.mrf.mxu0
      %1789 = vmatprep.mubr.bf16.mxu0 0
      %1790 = vmatmul.mubr.bf16.gmra.mxu0 %v1671
      %v1791 = vpop.f32.mrf.mxu0
      %v1792 = vadd.f32 0.0, %v1791
      %v1793 = vpop.f32.mrf.mxu0
      %v1794 = vpop.f32.mrf.mxu0
      %v1795 = vadd.f32 0.0, %v1794
      %v1796 = vpop.f32.mrf.mxu0
      %1797 = vdwg.mxu0
      %v1798 = vadd.f32 %v1587, %v1760
      %v1799 = vadd.f32 %v1588, %v1763
      %v1800 = vadd.f32 %v1589, %v1768
      %v1801 = vadd.f32 %v1590, %v1771
      %v1802 = vadd.f32 %v1591, %v1776
      %v1803 = vadd.f32 %v1592, %v1779
      %v1804 = vadd.f32 %v1593, %v1784
      %v1805 = vadd.f32 %v1594, %v1787
      %v1806 = vadd.f32 %v1595, %v1792
      %v1807 = vadd.f32 %v1596, %v1795
      %v1808 = vld [vmem:[%s261 + $0x8] sm:$0x8]
      %s1809 = scalar_lea.vmem %s1, 512
      %v1810 = vld [vmem:[%s1809] sm:$0xf]
      %v1811 = vld [vmem:[%s1809 + $0x4] sm:$0xf]
      %v1812 = vld [vmem:[%s1809 + $0x8] sm:$0xf]
      %v1813 = vld [vmem:[%s1809 + $0xc] sm:$0xf]
      %v1814 = vld [vmem:[%s1809 + $0x10] sm:$0xf]
      %v1815 = vld [vmem:[%s1809 + $0x14] sm:$0xf]
      %v1816 = vld [vmem:[%s1809 + $0x18] sm:$0xf]
      %v1817 = vld [vmem:[%s1809 + $0x1c] sm:$0xf]
      %v1818 = vld [vmem:[%s1809 + $0x20] sm:$0xf]
      %v1819 = vld [vmem:[%s1809 + $0x24] sm:$0xf]
      %v1820 = vld [vmem:[%s1809 + $0x28] sm:$0xf]
      %v1821 = vld [vmem:[%s1809 + $0x2c] sm:$0xf]
      %v1822 = vld [vmem:[%s1809 + $0x30] sm:$0xf]
      %v1823 = vld [vmem:[%s1809 + $0x34] sm:$0xf]
      %v1824 = vld [vmem:[%s1809 + $0x38] sm:$0xf]
      %v1825 = vld [vmem:[%s1809 + $0x3c] sm:$0xf]
      %v1827 = vunpack.c.l.b16 %v1808
      %v1828 = vpack.c.b16 %v1434, %v1827
      %vm1829 = vcmask 1044480
      %v1830 = vrot.slane %v1828, 3
      %v1831 = vrot.slane %v1445, 3
      %v1832 = vsel %vm1829, %v1830, %v1831
      %v1833 = vrot.slane %v1446, 3
      %v1834 = vsel %vm1829, %v1831, %v1833
      %v1835 = vrot.slane %v1447, 3
      %v1836 = vsel %vm1829, %v1833, %v1835
      %v1837 = vrot.slane %v1448, 3
      %v1838 = vsel %vm1829, %v1835, %v1837
      %v1839 = vrot.slane %v1617, 3
      %v1840 = vsel %vm1829, %v1837, %v1839
      %v1862 = vunpack.c.l.b16 %v1810
      %v1863 = vunpack.c.l.b16 %v1811
      %v1864 = vunpack.c.l.b16 %v1812
      %v1865 = vunpack.c.l.b16 %v1813
      %v1866 = vunpack.c.l.b16 %v1814
      %v1867 = vunpack.c.l.b16 %v1815
      %v1868 = vunpack.c.l.b16 %v1816
      %v1869 = vunpack.c.l.b16 %v1817
      %v1870 = vunpack.c.l.b16 %v1818
      %v1871 = vunpack.c.l.b16 %v1819
      %v1872 = vunpack.c.l.b16 %v1820
      %v1873 = vunpack.c.l.b16 %v1821
      %v1874 = vunpack.c.l.b16 %v1822
      %v1875 = vunpack.c.l.b16 %v1823
      %v1876 = vunpack.c.l.b16 %v1824
      %v1877 = vunpack.c.l.b16 %v1825
      %v1878 = vpack.c.b16 %v1863, %v1862
      %v1879 = vpack.c.b16 %v1865, %v1864
      %v1880 = vpack.c.b16 %v1867, %v1866
      %v1881 = vpack.c.b16 %v1869, %v1868
      %v1882 = vpack.c.b16 %v1871, %v1870
      %v1883 = vpack.c.b16 %v1873, %v1872
      %v1884 = vpack.c.b16 %v1875, %v1874
      %v1885 = vpack.c.b16 %v1877, %v1876
      %1894 = vmatprep.subr.bf16.mxu0 0
      %1895 = vmatpush1.bf16.msra.mxu0 %v1885
      %1896 = vmatprep.subr.bf16.mxu0 0
      %1897 = vmatpush1.bf16.msra.mxu0 %v1884
      %1898 = vmatprep.subr.bf16.mxu0 0
      %1899 = vmatpush1.bf16.msra.mxu0 %v1883
      %1900 = vmatprep.subr.bf16.mxu0 0
      %1901 = vmatpush1.bf16.msra.mxu0 %v1882
      %1902 = vmatprep.subr.bf16.mxu0 0
      %1903 = vmatpush1.bf16.msra.mxu0 %v1881
      %1904 = vmatprep.subr.bf16.mxu0 0
      %1905 = vmatpush1.bf16.msra.mxu0 %v1880
      %1906 = vmatprep.subr.bf16.mxu0 0
      %1907 = vmatpush1.bf16.msra.mxu0 %v1879
      %1908 = vmatprep.subr.bf16.mxu0 0
      %1909 = vmatpush1.bf16.msra.mxu0 %v1878
      %1910 = vmatprep.subr.bf16.mxu0 0
      %1911 = vmatpush2.bf16.msra.mxu0 0
      %1912 = vmatprep.subr.bf16.mxu0 0
      %1913 = vmatpush2.bf16.msra.mxu0 0
      %1914 = vmatprep.subr.bf16.mxu0 0
      %1915 = vmatpush2.bf16.msra.mxu0 0
      %1916 = vmatprep.subr.bf16.mxu0 0
      %1917 = vmatpush2.bf16.msra.mxu0 0
      %1918 = vmatprep.subr.bf16.mxu0 0
      %1919 = vmatpush2.bf16.msra.mxu0 0
      %1920 = vmatprep.subr.bf16.mxu0 0
      %1921 = vmatpush2.bf16.msra.mxu0 0
      %1922 = vmatprep.subr.bf16.mxu0 0
      %1923 = vmatpush2.bf16.msra.mxu0 0
      %1924 = vmatprep.subr.bf16.mxu0 0
      %1925 = vmatpush2.bf16.msra.mxu0 0
      %1926 = vmatprep.mubr.bf16.mxu0 0
      %1927 = vmatmul.mubr.bf16.gmra.mxu0 %v1832
      %v1928 = vpop.f32.mrf.mxu0
      %v1929 = vadd.f32 0.0, %v1928
      %v1930 = vpop.f32.mrf.mxu0
      %v1931 = vpop.f32.mrf.mxu0
      %v1932 = vadd.f32 0.0, %v1931
      %v1933 = vpop.f32.mrf.mxu0
      %1934 = vmatprep.mubr.bf16.mxu0 0
      %1935 = vmatmul.mubr.bf16.gmra.mxu0 %v1834
      %v1936 = vpop.f32.mrf.mxu0
      %v1937 = vadd.f32 0.0, %v1936
      %v1938 = vpop.f32.mrf.mxu0
      %v1939 = vpop.f32.mrf.mxu0
      %v1940 = vadd.f32 0.0, %v1939
      %v1941 = vpop.f32.mrf.mxu0
      %1942 = vmatprep.mubr.bf16.mxu0 0
      %1943 = vmatmul.mubr.bf16.gmra.mxu0 %v1836
      %v1944 = vpop.f32.mrf.mxu0
      %v1945 = vadd.f32 0.0, %v1944
      %v1946 = vpop.f32.mrf.mxu0
      %v1947 = vpop.f32.mrf.mxu0
      %v1948 = vadd.f32 0.0, %v1947
      %v1949 = vpop.f32.mrf.mxu0
      %1950 = vmatprep.mubr.bf16.mxu0 0
      %1951 = vmatmul.mubr.bf16.gmra.mxu0 %v1838
      %v1952 = vpop.f32.mrf.mxu0
      %v1953 = vadd.f32 0.0, %v1952
      %v1954 = vpop.f32.mrf.mxu0
      %v1955 = vpop.f32.mrf.mxu0
      %v1956 = vadd.f32 0.0, %v1955
      %v1957 = vpop.f32.mrf.mxu0
      %1958 = vmatprep.mubr.bf16.mxu0 0
      %1959 = vmatmul.mubr.bf16.gmra.mxu0 %v1840
      %v1960 = vpop.f32.mrf.mxu0
      %v1961 = vadd.f32 0.0, %v1960
      %v1962 = vpop.f32.mrf.mxu0
      %v1963 = vpop.f32.mrf.mxu0
      %v1964 = vadd.f32 0.0, %v1963
      %v1965 = vpop.f32.mrf.mxu0
      %1966 = vdwg.mxu0
      %v1967 = vadd.f32 %v1798, %v1929
      %v1968 = vadd.f32 %v1799, %v1932
      %v1969 = vadd.f32 %v1800, %v1937
      %v1970 = vadd.f32 %v1801, %v1940
      %v1971 = vadd.f32 %v1802, %v1945
      %v1972 = vadd.f32 %v1803, %v1948
      %v1973 = vadd.f32 %v1804, %v1953
      %v1974 = vadd.f32 %v1805, %v1956
      %v1975 = vadd.f32 %v1806, %v1961
      %v1976 = vadd.f32 %v1807, %v1964
      %v1977 = vld [vmem:[%s2] sm:$0x1]
      %v1979 = vlaneseq
      %v1980 = vshrl.u32 %v1979, 7
      %v1981 = vsub.s32 0, %v1980
      %v1982 = vrot.slane %v1977, %v1981
      %v1984 = vadd.f32 %v1967, %v1982
      %v1985 = vadd.f32 %v1968, %v1982
      %v1986 = vadd.f32 %v1969, %v1982
      %v1987 = vadd.f32 %v1970, %v1982
      %v1988 = vadd.f32 %v1971, %v1982
      %v1989 = vadd.f32 %v1972, %v1982
      %v1990 = vadd.f32 %v1973, %v1982
      %v1991 = vadd.f32 %v1974, %v1982
      %v1992 = vadd.f32 %v1975, %v1982
      %v1993 = vadd.f32 %v1976, %v1982
      %v1994 = vld [vmem:[%s266] sm:$0xf]
      %v1995 = vld [vmem:[%s266 + $0x4] sm:$0xf]
      %v1996 = vld [vmem:[%s266 + $0x8] sm:$0xf]
      %v1997 = vld [vmem:[%s266 + $0xc] sm:$0xf]
      %v1998 = vld [vmem:[%s266 + $0x10] sm:$0xf]
      %v1999 = vld [vmem:[%s266 + $0x14] sm:$0xf]
      %v2000 = vld [vmem:[%s266 + $0x18] sm:$0xf]
      %v2001 = vld [vmem:[%s266 + $0x1c] sm:$0xf]
      %v2002 = vld [vmem:[%s266 + $0x20] sm:$0xf]
      %v2003 = vld [vmem:[%s266 + $0x24] sm:$0xf]
      %v2004 = vld [vmem:[%s4] sm:$0xf]
      %v2005 = vld [vmem:[%s4 + $0x4] sm:$0xf]
      %v2006 = vld [vmem:[%s4 + $0x8] sm:$0xf]
      %v2007 = vld [vmem:[%s4 + $0xc] sm:$0xf]
      %v2008 = vld [vmem:[%s4 + $0x10] sm:$0xf]
      %v2009 = vld [vmem:[%s4 + $0x14] sm:$0xf]
      %v2010 = vld [vmem:[%s4 + $0x18] sm:$0xf]
      %v2011 = vld [vmem:[%s4 + $0x1c] sm:$0xf]
      %v2012 = vld [vmem:[%s4 + $0x20] sm:$0xf]
      %v2013 = vld [vmem:[%s4 + $0x24] sm:$0xf]
      %v2014 = vld [vmem:[%s4 + $0x28] sm:$0xf]
      %v2015 = vld [vmem:[%s4 + $0x2c] sm:$0xf]
      %v2016 = vld [vmem:[%s4 + $0x30] sm:$0xf]
      %v2017 = vld [vmem:[%s4 + $0x34] sm:$0xf]
      %v2018 = vld [vmem:[%s4 + $0x38] sm:$0xf]
      %v2019 = vld [vmem:[%s4 + $0x3c] sm:$0xf]
      %v2030 = vunpack.c.l.b16 %v1994
      %v2031 = vunpack.c.l.b16 %v1995
      %v2032 = vunpack.c.l.b16 %v1996
      %v2033 = vunpack.c.l.b16 %v1997
      %v2034 = vunpack.c.l.b16 %v1998
      %v2035 = vunpack.c.l.b16 %v1999
      %v2036 = vunpack.c.l.b16 %v2000
      %v2037 = vunpack.c.l.b16 %v2001
      %v2038 = vunpack.c.l.b16 %v2002
      %v2039 = vunpack.c.l.b16 %v2003
      %v2040 = vpack.c.b16 %v2031, %v2030
      %v2041 = vpack.c.b16 %v2033, %v2032
      %v2042 = vpack.c.b16 %v2035, %v2034
      %v2043 = vpack.c.b16 %v2037, %v2036
      %v2044 = vpack.c.b16 %v2039, %v2038
      %v2066 = vunpack.c.l.b16 %v2004
      %v2067 = vunpack.c.l.b16 %v2005
      %v2068 = vunpack.c.l.b16 %v2006
      %v2069 = vunpack.c.l.b16 %v2007
      %v2070 = vunpack.c.l.b16 %v2008
      %v2071 = vunpack.c.l.b16 %v2009
      %v2072 = vunpack.c.l.b16 %v2010
      %v2073 = vunpack.c.l.b16 %v2011
      %v2074 = vunpack.c.l.b16 %v2012
      %v2075 = vunpack.c.l.b16 %v2013
      %v2076 = vunpack.c.l.b16 %v2014
      %v2077 = vunpack.c.l.b16 %v2015
      %v2078 = vunpack.c.l.b16 %v2016
      %v2079 = vunpack.c.l.b16 %v2017
      %v2080 = vunpack.c.l.b16 %v2018
      %v2081 = vunpack.c.l.b16 %v2019
      %v2082 = vpack.c.b16 %v2067, %v2066
      %v2083 = vpack.c.b16 %v2069, %v2068
      %v2084 = vpack.c.b16 %v2071, %v2070
      %v2085 = vpack.c.b16 %v2073, %v2072
      %v2086 = vpack.c.b16 %v2075, %v2074
      %v2087 = vpack.c.b16 %v2077, %v2076
      %v2088 = vpack.c.b16 %v2079, %v2078
      %v2089 = vpack.c.b16 %v2081, %v2080
      %2098 = vmatprep.subr.bf16.mxu0 0
      %2099 = vmatpush1.bf16.msra.mxu0 %v2089
      %2100 = vmatprep.subr.bf16.mxu0 0
      %2101 = vmatpush1.bf16.msra.mxu0 %v2088
      %2102 = vmatprep.subr.bf16.mxu0 0
      %2103 = vmatpush1.bf16.msra.mxu0 %v2087
      %2104 = vmatprep.subr.bf16.mxu0 0
      %2105 = vmatpush1.bf16.msra.mxu0 %v2086
      %2106 = vmatprep.subr.bf16.mxu0 0
      %2107 = vmatpush1.bf16.msra.mxu0 %v2085
      %2108 = vmatprep.subr.bf16.mxu0 0
      %2109 = vmatpush1.bf16.msra.mxu0 %v2084
      %2110 = vmatprep.subr.bf16.mxu0 0
      %2111 = vmatpush1.bf16.msra.mxu0 %v2083
      %2112 = vmatprep.subr.bf16.mxu0 0
      %2113 = vmatpush1.bf16.msra.mxu0 %v2082
      %2114 = vmatprep.subr.bf16.mxu0 0
      %2115 = vmatpush2.bf16.msra.mxu0 0
      %2116 = vmatprep.subr.bf16.mxu0 0
      %2117 = vmatpush2.bf16.msra.mxu0 0
      %2118 = vmatprep.subr.bf16.mxu0 0
      %2119 = vmatpush2.bf16.msra.mxu0 0
      %2120 = vmatprep.subr.bf16.mxu0 0
      %2121 = vmatpush2.bf16.msra.mxu0 0
      %2122 = vmatprep.subr.bf16.mxu0 0
      %2123 = vmatpush2.bf16.msra.mxu0 0
      %2124 = vmatprep.subr.bf16.mxu0 0
      %2125 = vmatpush2.bf16.msra.mxu0 0
      %2126 = vmatprep.subr.bf16.mxu0 0
      %2127 = vmatpush2.bf16.msra.mxu0 0
      %2128 = vmatprep.subr.bf16.mxu0 0
      %2129 = vmatpush2.bf16.msra.mxu0 0
      %2130 = vmatprep.mubr.bf16.mxu0 0
      %2131 = vmatmul.mubr.bf16.gmra.mxu0 %v2040
      %v2132 = vpop.f32.mrf.mxu0
      %v2133 = vadd.f32 0.0, %v2132
      %v2134 = vpop.f32.mrf.mxu0
      %v2135 = vpop.f32.mrf.mxu0
      %v2136 = vadd.f32 0.0, %v2135
      %v2137 = vpop.f32.mrf.mxu0
      %2138 = vmatprep.mubr.bf16.mxu0 0
      %2139 = vmatmul.mubr.bf16.gmra.mxu0 %v2041
      %v2140 = vpop.f32.mrf.mxu0
      %v2141 = vadd.f32 0.0, %v2140
      %v2142 = vpop.f32.mrf.mxu0
      %v2143 = vpop.f32.mrf.mxu0
      %v2144 = vadd.f32 0.0, %v2143
      %v2145 = vpop.f32.mrf.mxu0
      %2146 = vmatprep.mubr.bf16.mxu0 0
      %2147 = vmatmul.mubr.bf16.gmra.mxu0 %v2042
      %v2148 = vpop.f32.mrf.mxu0
      %v2149 = vadd.f32 0.0, %v2148
      %v2150 = vpop.f32.mrf.mxu0
      %v2151 = vpop.f32.mrf.mxu0
      %v2152 = vadd.f32 0.0, %v2151
      %v2153 = vpop.f32.mrf.mxu0
      %2154 = vmatprep.mubr.bf16.mxu0 0
      %2155 = vmatmul.mubr.bf16.gmra.mxu0 %v2043
      %v2156 = vpop.f32.mrf.mxu0
      %v2157 = vadd.f32 0.0, %v2156
      %v2158 = vpop.f32.mrf.mxu0
      %v2159 = vpop.f32.mrf.mxu0
      %v2160 = vadd.f32 0.0, %v2159
      %v2161 = vpop.f32.mrf.mxu0
      %2162 = vmatprep.mubr.bf16.mxu0 0
      %2163 = vmatmul.mubr.bf16.gmra.mxu0 %v2044
      %v2164 = vpop.f32.mrf.mxu0
      %v2165 = vadd.f32 0.0, %v2164
      %v2166 = vpop.f32.mrf.mxu0
      %v2167 = vpop.f32.mrf.mxu0
      %v2168 = vadd.f32 0.0, %v2167
      %v2169 = vpop.f32.mrf.mxu0
      %2170 = vdwg.mxu0
      %v2171 = vadd.f32 %v1984, %v2133
      %v2172 = vadd.f32 %v1985, %v2136
      %v2173 = vadd.f32 %v1986, %v2141
      %v2174 = vadd.f32 %v1987, %v2144
      %v2175 = vadd.f32 %v1988, %v2149
      %v2176 = vadd.f32 %v1989, %v2152
      %v2177 = vadd.f32 %v1990, %v2157
      %v2178 = vadd.f32 %v1991, %v2160
      %v2179 = vadd.f32 %v1992, %v2165
      %v2180 = vadd.f32 %v1993, %v2168
      %v2181 = vld [vmem:[%s5] sm:$0x1]
      %v2183 = vlaneseq
      %v2184 = vshrl.u32 %v2183, 7
      %v2185 = vsub.s32 0, %v2184
      %v2186 = vrot.slane %v2181, %v2185
      %v2188 = vadd.f32 %v2171, %v2186
      %v2189 = vadd.f32 %v2172, %v2186
      %v2190 = vadd.f32 %v2173, %v2186
      %v2191 = vadd.f32 %v2174, %v2186
      %v2192 = vadd.f32 %v2175, %v2186
      %v2193 = vadd.f32 %v2176, %v2186
      %v2194 = vadd.f32 %v2177, %v2186
      %v2195 = vadd.f32 %v2178, %v2186
      %v2196 = vadd.f32 %v2179, %v2186
      %v2197 = vadd.f32 %v2180, %v2186
      %v2198 = vmax.f32 %v2188, 0.0
      %v2199 = vmax.f32 %v2189, 0.0
      %v2200 = vmax.f32 %v2190, 0.0
      %v2201 = vmax.f32 %v2191, 0.0
      %v2202 = vmax.f32 %v2192, 0.0
      %v2203 = vmax.f32 %v2193, 0.0
      %v2204 = vmax.f32 %v2194, 0.0
      %v2205 = vmax.f32 %v2195, 0.0
      %v2206 = vmax.f32 %v2196, 0.0
      %v2207 = vmax.f32 %v2197, 0.0
      %v2208 = vpack.c.bf16 %v2199, %v2198
      %v2209 = vpack.c.bf16 %v2201, %v2200
      %v2210 = vpack.c.bf16 %v2203, %v2202
      %v2211 = vpack.c.bf16 %v2205, %v2204
      %v2212 = vpack.c.bf16 %v2207, %v2206
      %v2218 = vunpack.c.l.b16 %v2208
      %v2219 = vunpack.c.h.b16 %v2208
      %v2220 = vunpack.c.l.b16 %v2209
      %v2221 = vunpack.c.h.b16 %v2209
      %v2222 = vunpack.c.l.b16 %v2210
      %v2223 = vunpack.c.h.b16 %v2210
      %v2224 = vunpack.c.l.b16 %v2211
      %v2225 = vunpack.c.h.b16 %v2211
      %v2226 = vunpack.c.l.b16 %v2212
      %v2227 = vunpack.c.h.b16 %v2212
      %v2228 = vpack.c.b16 %v2218, %v2218
      %v2229 = vpack.c.b16 %v2219, %v2219
      %v2230 = vpack.c.b16 %v2220, %v2220
      %v2231 = vpack.c.b16 %v2221, %v2221
      %v2232 = vpack.c.b16 %v2222, %v2222
      %v2233 = vpack.c.b16 %v2223, %v2223
      %v2234 = vpack.c.b16 %v2224, %v2224
      %v2235 = vpack.c.b16 %v2225, %v2225
      %v2236 = vpack.c.b16 %v2226, %v2226
      %v2237 = vpack.c.b16 %v2227, %v2227
      %2248 = vst [vmem:[%s271] sm:$0xf] %v2228
      %2249 = vst [vmem:[%s271 + $0x4] sm:$0xf] %v2229
      %2250 = vst [vmem:[%s271 + $0x8] sm:$0xf] %v2230
      %2251 = vst [vmem:[%s271 + $0xc] sm:$0xf] %v2231
      %2252 = vst [vmem:[%s271 + $0x10] sm:$0xf] %v2232
      %2253 = vst [vmem:[%s271 + $0x14] sm:$0xf] %v2233
      %2254 = vst [vmem:[%s271 + $0x18] sm:$0xf] %v2234
      %2255 = vst [vmem:[%s271 + $0x1c] sm:$0xf] %v2235
      %2256 = vst [vmem:[%s271 + $0x20] sm:$0xf] %v2236
      %2257 = vst [vmem:[%s271 + $0x24] sm:$0xf] %v2237
      %p2258 = scmp.lt.s32.totalorder %s17, 1
      %s2259 = scalar_select %p2258, %s17, 1
      %s2260 = smul.addr %s2259, 10
      %s2261 = smul.addr %s2260, 4
      %s2262 = scalar_lea.vmem %s6, %s2261
      // Predicated region
      $region45: #{basic_block_forward.3} parent=43 // pred_check
        %p2263 = pneg %p171
      $region46: #{basic_block_forward.3} parent=43 // pred_check_branch
        %2265 = sbr.rel (%p2263) target = $region48
      $region47: #{basic_block_forward.3} parent=43 // pred_region
        _
      $region48: #{basic_block_forward.3} parent=43 // pred_fallthru
        _
    $region44: #{basic_block_forward.3} parent=5 // pred_fallthru
      _
    %p2266 = scmp.le.s32.totalorder 2, %s12
    // Predicated region
    $region49: #{basic_block_forward.3} parent=5 // pred_check
      %p2267 = pneg %p2266
    $region50: #{basic_block_forward.3} parent=5 // pred_check_branch
      %2269 = sbr.rel (%p2267) target = $region52
    $region51: #{basic_block_forward.3} parent=5 // pred_region
      %s2270 = ssub.s32 %s12, 2
      // Predicated region
      $region53: #{basic_block_forward.3} parent=51 // pred_check
        %p2271 = pneg %p177
      $region54: #{basic_block_forward.3} parent=51 // pred_check_branch
        %2273 = sbr.rel (%p2271) target = $region56
      $region55: #{basic_block_forward.3} parent=51 // pred_region
        %p2274 = scmp.lt.s32.totalorder %s18, 1
        %s2275 = scalar_select %p2274, %s18, 1
        %s2276 = smul.addr %s2275, 10
        %s2277 = smul.addr %s2276, 4
        %s2278 = scalar_lea.vmem %s6, %s2277
      $region56: #{basic_block_forward.3} parent=51 // pred_fallthru
        _
    $region52: #{basic_block_forward.3} parent=5 // pred_fallthru
      _
  $region6: #{basic_block_forward.3} parent=0 // loop_footer
    %s16 = sadd.s32 1, %s12
  $region7: #{basic_block_forward.3} parent=0 // loop_footer_branch
    %11 = sbr.rel target = $region3
  $region8: #{basic_block_forward.3} parent=0 // loop_exit
    _

</llo_original>
